<compile_context>
chip_gen: v7x
topology: tpu7x:2x2x1
jax: 0.10.0
libtpu: 0.0.40
codegen_flags: <defaults>
</compile_context>

<pallas_src>
import jax
import jax.numpy as jnp
from jax import lax
from jax.experimental import pallas as pl
from jax.experimental.pallas import tpu as pltpu


def _round_up(x, m):
    return (x + m - 1) // m * m


def _dual_encoder_kernel(x_ref,                 # (2*TB, H) bf16: [anchor tile ; candidate tile]
                         w1_ref, b1_ref,        # (H,512) bf16, (1,512) f32
                         w2_ref, b2_ref,        # (512,D) bf16, (1,D)  f32
                         w3a_ref, w3c_ref,      # (D,128) bf16 each (split of the concat weight)
                         b3_ref,                # (1,128) f32
                         w4_ref,                # (1,128) bf16
                         b4_ref,                # (1,)    f32 in SMEM
                         out_ref):              # (1,1,TB) f32  (lane-dense score row)
    tb = out_ref.shape[-1]

    # ---- shared encoder on the stacked slab: one matmul per layer for both inputs ----
    x = x_ref[...]
    h = jnp.dot(x, w1_ref[...], preferred_element_type=jnp.float32) + b1_ref[...]
    h = jnp.maximum(h, 0.0)                                              # f32 ReLU
    z = jnp.dot(h.astype(w2_ref.dtype), w2_ref[...],
                preferred_element_type=jnp.float32) + b2_ref[...]        # (2*TB, D) f32

    a_z = z[:tb].astype(w3a_ref.dtype)                                   # (TB, D) bf16
    c_z = z[tb:].astype(w3c_ref.dtype)                                   # (TB, D) bf16

    # interaction Linear(2D,128) on concat([a_z, c_z]) == a_z@W3a + c_z@W3c
    h3 = (jnp.dot(a_z, w3a_ref[...], preferred_element_type=jnp.float32)
          + jnp.dot(c_z, w3c_ref[...], preferred_element_type=jnp.float32)
          + b3_ref[...])
    h3 = jnp.maximum(h3, 0.0)                                            # (TB, 128) f32

    # final Linear(128,1): contract the 128 lanes of h3 against the w4 row.
    # Result is (1, TB) -> already lane-dense, no masked (TB,1) stores, no relayout.
    score = lax.dot_general(w4_ref[...], h3.astype(w4_ref.dtype),
                            (((1,), (1,)), ((), ())),
                            preferred_element_type=jnp.float32) + b4_ref[0]
    out_ref[...] = score.reshape(out_ref.shape)


def dual_encoder_with_interaction(anchor, candidate, params, *, block_b=256,
                                  compute_dtype=jnp.bfloat16):
    """anchor, candidate: (B, H) float32. Returns score of shape (B,) float32."""
    B, H = anchor.shape
    (w1, b1, w2, b2, w3a, w3c, b3, w4, b4) = params
    D = w2.shape[1]

    # batch tile: multiple of 16 (bf16 sublane tiling); pad B up to a whole number of tiles.
    tb = min(_round_up(block_b, 16), _round_up(B, 16))
    num_tiles = pl.cdiv(B, tb)
    pad_b = num_tiles * tb

    def prep(v):
        v = v.astype(compute_dtype)
        v = jnp.pad(v, ((0, pad_b - B), (0, 0)))
        return v.reshape(num_tiles, tb, H)

    # tile i of the stacked input = [anchor rows of tile i ; candidate rows of tile i]
    x = jnp.concatenate([prep(anchor), prep(candidate)], axis=1).reshape(num_tiles * 2 * tb, H)

    w1c, w2c = w1.astype(compute_dtype), w2.astype(compute_dtype)
    w3ac, w3cc = w3a.astype(compute_dtype), w3c.astype(compute_dtype)
    w4c = w4.astype(compute_dtype)                       # (1, 128)
    b1f, b2f, b3f = (b.astype(jnp.float32) for b in (b1, b2, b3))
    b4f = b4.reshape(1).astype(jnp.float32)              # scalar bias -> SMEM

    def const(arr):                                      # full-array block, resident across tiles
        return pl.BlockSpec(arr.shape, lambda i: tuple(0 for _ in arr.shape))

    # rough VMEM budget (weights + double-buffered input block + f32 intermediates)
    isz = jnp.dtype(compute_dtype).itemsize
    weights_bytes = (w1c.size + w2c.size + w3ac.size + w3cc.size + w4c.size) * isz \
                    + (b1f.size + b2f.size + b3f.size + 1) * 4
    in_block_bytes = 2 * (2 * tb * H) * isz
    act_bytes = (2 * tb * 512 + 2 * tb * D + tb * 128) * 4
    vmem_need = weights_bytes + in_block_bytes + 2 * act_bytes + 2 * tb * 4
    vmem_limit = int(min(48 * 2 ** 20, max(16 * 2 ** 20, 2 * vmem_need)))  # fits v7x's 64 MiB

    flops = (2 * (2 * pad_b) * (H * 512 + 512 * D)       # encoder on stacked rows
             + 2 * pad_b * (2 * D * 128)                 # interaction Linear(2D,128)
             + 2 * pad_b * 128)                          # Linear(128,1)
    bytes_accessed = int(x.size * isz + weights_bytes + pad_b * 4)

    out = pl.pallas_call(
        _dual_encoder_kernel,
        out_shape=jax.ShapeDtypeStruct((num_tiles, 1, tb), jnp.float32),
        grid=(num_tiles,),
        in_specs=[
            pl.BlockSpec((2 * tb, H), lambda i: (i, 0)),            # stacked anchor/candidate tile
            const(w1c), const(b1f),
            const(w2c), const(b2f),
            const(w3ac), const(w3cc), const(b3f),
            const(w4c),
            pl.BlockSpec(memory_space=pltpu.MemorySpace.SMEM),      # scalar b4
        ],
        out_specs=pl.BlockSpec((1, 1, tb), lambda i: (i, 0, 0)),    # lane-dense score row
        compiler_params=pltpu.CompilerParams(
            dimension_semantics=("parallel",),                      # megacore on v7x
            vmem_limit_bytes=vmem_limit),
        cost_estimate=pl.CostEstimate(flops=flops, transcendentals=0,
                                      bytes_accessed=bytes_accessed),
    )(x, w1c, b1f, w2c, b2f, w3ac, w3cc, b3f, w4c, b4f)

    return out.reshape(num_tiles * tb)[:B]                          # squeeze(-1) -> (B,)


def init_params(key, hidden_dim, out_dim):
    """Deterministic synthetic init matching the nn.Module's parameter shapes (f32)."""
    ks = jax.random.split(key, 4)

    def lin(k, fan_in, fan_out):
        scale = 1.0 / jnp.sqrt(fan_in)
        kw, kb = jax.random.split(k)
        w = jax.random.uniform(kw, (fan_in, fan_out), jnp.float32, -scale, scale)
        b = jax.random.uniform(kb, (1, fan_out), jnp.float32, -scale, scale)
        return w, b

    w1, b1 = lin(ks[0], hidden_dim, 512)       # encoder Linear(H, 512)
    w2, b2 = lin(ks[1], 512, out_dim)          # encoder Linear(512, D)
    w3, b3 = lin(ks[2], 2 * out_dim, 128)      # interaction Linear(2D, 128)
    w4, b4 = lin(ks[3], 128, 1)                # interaction Linear(128, 1)

    w3a, w3c = w3[:out_dim], w3[out_dim:]      # split concat weight into a_z / c_z halves
    return (w1, b1, w2, b2, w3a, w3c, b3, w4.T, b4)   # w4 stored as (1,128), b4 as (1,1)


def reference_forward(anchor, candidate, params, compute_dtype=jnp.bfloat16):
    """Pure-JAX reference with the same bf16-input / f32-accumulate numerics."""
    (w1, b1, w2, b2, w3a, w3c, b3, w4, b4) = params
    cd = compute_dtype

    def enc(v):
        h = jnp.dot(v.astype(cd), w1.astype(cd), preferred_element_type=jnp.float32) + b1
        h = jnp.maximum(h, 0.0)
        return jnp.dot(h.astype(cd), w2.astype(cd), preferred_element_type=jnp.float32) + b2

    a_z, c_z = enc(anchor), enc(candidate)
    h3 = (jnp.dot(a_z.astype(cd), w3a.astype(cd), preferred_element_type=jnp.float32)
          + jnp.dot(c_z.astype(cd), w3c.astype(cd), preferred_element_type=jnp.float32) + b3)
    h3 = jnp.maximum(h3, 0.0)
    score = jnp.dot(h3.astype(cd), w4.astype(cd).T, preferred_element_type=jnp.float32) + b4
    return score[:, 0]


if __name__ == "__main__":
    # Small shapes consistent with the module (hidden_dim / out_dim scaled down; the
    # 512 / 128 hidden widths are architectural constants of the module).
    B, HIDDEN_DIM, OUT_DIM = 48, 256, 128

    key = jax.random.PRNGKey(0)
    k_a, k_c, k_p = jax.random.split(key, 3)
    anchor = jax.random.normal(k_a, (B, HIDDEN_DIM), jnp.float32)
    candidate = jax.random.normal(k_c, (B, HIDDEN_DIM), jnp.float32)
    params = init_params(k_p, HIDDEN_DIM, OUT_DIM)

    ref = reference_forward(anchor, candidate, params)

    # multi-tile path: 3 batch tiles of 16 rows, weights resident across the grid
    score = dual_encoder_with_interaction(anchor, candidate, params, block_b=16)
    score = jax.block_until_ready(score)
    assert score.shape == (B,), score.shape
    assert jnp.allclose(score, ref, atol=2e-3, rtol=2e-3), (score, ref)

    # default-block path with B not a multiple of the tile (exercises batch padding)
    score2 = dual_encoder_with_interaction(anchor[:10], candidate[:10], params)
    score2 = jax.block_until_ready(score2)
    assert score2.shape == (10,), score2.shape
    assert jnp.allclose(score2, ref[:10], atol=2e-3, rtol=2e-3), (score2, ref[:10])

    print("KERNEL_OK")
</pallas_src>

<mosaic_0001>
module attributes {stable_mosaic.version = 11 : i64} {
  func.func @_dual_encoder_kernel(%arg0: i32, %arg1: memref<32x256xbf16, #tpu.memory_space<vmem>>, %arg2: memref<256x512xbf16, #tpu.memory_space<vmem>>, %arg3: memref<1x512xf32, #tpu.memory_space<vmem>>, %arg4: memref<512x128xbf16, #tpu.memory_space<vmem>>, %arg5: memref<1x128xf32, #tpu.memory_space<vmem>>, %arg6: memref<128x128xbf16, #tpu.memory_space<vmem>>, %arg7: memref<128x128xbf16, #tpu.memory_space<vmem>>, %arg8: memref<1x128xf32, #tpu.memory_space<vmem>>, %arg9: memref<1x128xbf16, #tpu.memory_space<vmem>>, %arg10: memref<1xf32, #tpu.memory_space<smem>>, %arg11: memref<1x1x16xf32, #tpu.memory_space<vmem>>) attributes {dimension_semantics = [#tpu.dimension_semantics<parallel>], iteration_bounds = array<i64: 3>, scalar_prefetch = 0 : i64, scratch_operands = 0 : i64, tpu.core_type = #tpu.core_type<tc>, window_params = [{transform_indices = @transform_0, window_bounds = array<i64: 32, 256>}, {pipeline_mode = #tpu.pipeline_mode<synchronous>, transform_indices = @transform_1, window_bounds = array<i64: 256, 512>}, {pipeline_mode = #tpu.pipeline_mode<synchronous>, transform_indices = @transform_2, window_bounds = array<i64: 1, 512>}, {pipeline_mode = #tpu.pipeline_mode<synchronous>, transform_indices = @transform_3, window_bounds = array<i64: 512, 128>}, {pipeline_mode = #tpu.pipeline_mode<synchronous>, transform_indices = @transform_4, window_bounds = array<i64: 1, 128>}, {pipeline_mode = #tpu.pipeline_mode<synchronous>, transform_indices = @transform_5, window_bounds = array<i64: 128, 128>}, {pipeline_mode = #tpu.pipeline_mode<synchronous>, transform_indices = @transform_6, window_bounds = array<i64: 128, 128>}, {pipeline_mode = #tpu.pipeline_mode<synchronous>, transform_indices = @transform_7, window_bounds = array<i64: 1, 128>}, {pipeline_mode = #tpu.pipeline_mode<synchronous>, transform_indices = @transform_8, window_bounds = array<i64: 1, 128>}, {transform_indices = @transform_9, window_bounds = array<i64: 1>}, {transform_indices = @transform_10, window_bounds = array<i64: 1, 1, 16>}]} {
    %c0 = arith.constant 0 : index
    %c0_0 = arith.constant 0 : index
    %0 = vector.load %arg1[%c0, %c0_0] : memref<32x256xbf16, #tpu.memory_space<vmem>>, vector<32x256xbf16>
    %c0_1 = arith.constant 0 : index
    %c0_2 = arith.constant 0 : index
    %1 = vector.load %arg2[%c0_1, %c0_2] : memref<256x512xbf16, #tpu.memory_space<vmem>>, vector<256x512xbf16>
    %cst = arith.constant dense<0.000000e+00> : vector<32x512xf32>
    %2 = tpu.matmul %0, %1, %cst {dimension_numbers = #tpu.dot_dimension_numbers<[1], [0], [0], [1], [0, 0, 1, 1], [], []>} : vector<32x256xbf16>, vector<256x512xbf16>, vector<32x512xf32> -> vector<32x512xf32>
    %c0_3 = arith.constant 0 : index
    %c0_4 = arith.constant 0 : index
    %3 = vector.load %arg3[%c0_3, %c0_4] : memref<1x512xf32, #tpu.memory_space<vmem>>, vector<1x512xf32>
    %4 = vector.broadcast %3 : vector<1x512xf32> to vector<32x512xf32>
    %5 = arith.addf %2, %4 : vector<32x512xf32>
    %cst_5 = arith.constant 0.000000e+00 : f32
    %6 = vector.broadcast %cst_5 : f32 to vector<32x512xf32>
    %7 = arith.maximumf %5, %6 : vector<32x512xf32>
    %8 = arith.truncf %7 : vector<32x512xf32> to vector<32x512xbf16>
    %c0_6 = arith.constant 0 : index
    %c0_7 = arith.constant 0 : index
    %9 = vector.load %arg4[%c0_6, %c0_7] : memref<512x128xbf16, #tpu.memory_space<vmem>>, vector<512x128xbf16>
    %cst_8 = arith.constant dense<0.000000e+00> : vector<32x128xf32>
    %10 = tpu.matmul %8, %9, %cst_8 {dimension_numbers = #tpu.dot_dimension_numbers<[1], [0], [0], [1], [0, 0, 1, 1], [], []>} : vector<32x512xbf16>, vector<512x128xbf16>, vector<32x128xf32> -> vector<32x128xf32>
    %c0_9 = arith.constant 0 : index
    %c0_10 = arith.constant 0 : index
    %11 = vector.load %arg5[%c0_9, %c0_10] : memref<1x128xf32, #tpu.memory_space<vmem>>, vector<1x128xf32>
    %12 = vector.broadcast %11 : vector<1x128xf32> to vector<32x128xf32>
    %13 = arith.addf %10, %12 : vector<32x128xf32>
    %14 = vector.extract_strided_slice %13 {offsets = [0, 0], sizes = [16, 128], strides = [1, 1]} : vector<32x128xf32> to vector<16x128xf32>
    %15 = arith.truncf %14 : vector<16x128xf32> to vector<16x128xbf16>
    %16 = vector.extract_strided_slice %13 {offsets = [16, 0], sizes = [16, 128], strides = [1, 1]} : vector<32x128xf32> to vector<16x128xf32>
    %17 = arith.truncf %16 : vector<16x128xf32> to vector<16x128xbf16>
    %c0_11 = arith.constant 0 : index
    %c0_12 = arith.constant 0 : index
    %18 = vector.load %arg6[%c0_11, %c0_12] : memref<128x128xbf16, #tpu.memory_space<vmem>>, vector<128x128xbf16>
    %cst_13 = arith.constant dense<0.000000e+00> : vector<16x128xf32>
    %19 = tpu.matmul %15, %18, %cst_13 {dimension_numbers = #tpu.dot_dimension_numbers<[1], [0], [0], [1], [0, 0, 1, 1], [], []>} : vector<16x128xbf16>, vector<128x128xbf16>, vector<16x128xf32> -> vector<16x128xf32>
    %c0_14 = arith.constant 0 : index
    %c0_15 = arith.constant 0 : index
    %20 = vector.load %arg7[%c0_14, %c0_15] : memref<128x128xbf16, #tpu.memory_space<vmem>>, vector<128x128xbf16>
    %cst_16 = arith.constant dense<0.000000e+00> : vector<16x128xf32>
    %21 = tpu.matmul %17, %20, %cst_16 {dimension_numbers = #tpu.dot_dimension_numbers<[1], [0], [0], [1], [0, 0, 1, 1], [], []>} : vector<16x128xbf16>, vector<128x128xbf16>, vector<16x128xf32> -> vector<16x128xf32>
    %22 = arith.addf %19, %21 : vector<16x128xf32>
    %c0_17 = arith.constant 0 : index
    %c0_18 = arith.constant 0 : index
    %23 = vector.load %arg8[%c0_17, %c0_18] : memref<1x128xf32, #tpu.memory_space<vmem>>, vector<1x128xf32>
    %24 = vector.broadcast %23 : vector<1x128xf32> to vector<16x128xf32>
    %25 = arith.addf %22, %24 : vector<16x128xf32>
    %cst_19 = arith.constant 0.000000e+00 : f32
    %26 = vector.broadcast %cst_19 : f32 to vector<16x128xf32>
    %27 = arith.maximumf %25, %26 : vector<16x128xf32>
    %c0_20 = arith.constant 0 : index
    %c0_21 = arith.constant 0 : index
    %28 = vector.load %arg9[%c0_20, %c0_21] : memref<1x128xbf16, #tpu.memory_space<vmem>>, vector<1x128xbf16>
    %29 = arith.truncf %27 : vector<16x128xf32> to vector<16x128xbf16>
    %cst_22 = arith.constant dense<0.000000e+00> : vector<1x16xf32>
    %30 = tpu.matmul %28, %29, %cst_22 {dimension_numbers = #tpu.dot_dimension_numbers<[1], [1], [0], [0], [0, 0, 1, 0], [], []>} : vector<1x128xbf16>, vector<16x128xbf16>, vector<1x16xf32> -> vector<1x16xf32>
    %c0_23 = arith.constant 0 : index
    %31 = memref.load %arg10[%c0_23] : memref<1xf32, #tpu.memory_space<smem>>
    %32 = vector.broadcast %31 : f32 to vector<1x16xf32>
    %33 = arith.addf %30, %32 : vector<1x16xf32>
    %34 = vector.shape_cast %33 : vector<1x16xf32> to vector<1x1x16xf32>
    %c0_24 = arith.constant 0 : index
    %c0_25 = arith.constant 0 : index
    %c0_26 = arith.constant 0 : index
    %35 = vector.load %arg11[%c0_24, %c0_25, %c0_26] : memref<1x1x16xf32, #tpu.memory_space<vmem>>, vector<1x1x16xf32>
    tpu.vector_store %arg11[%c0_24, %c0_25, %c0_26], %34 {strides = array<i32>} : memref<1x1x16xf32, #tpu.memory_space<vmem>>, vector<1x1x16xf32>,
    return
  }
  func.func @transform_0(%arg0: i32) -> (i32, i32) {
    %c0_i32 = arith.constant 0 : i32
    %c0_i32_0 = arith.constant 0 : i32
    return %arg0, %c0_i32 : i32, i32
  }
  func.func @transform_1(%arg0: i32) -> (i32, i32) {
    %c0_i32 = arith.constant 0 : i32
    %c0_i32_0 = arith.constant 0 : i32
    %c0_i32_1 = arith.constant 0 : i32
    return %c0_i32, %c0_i32_0 : i32, i32
  }
  func.func @transform_2(%arg0: i32) -> (i32, i32) {
    %c0_i32 = arith.constant 0 : i32
    %c0_i32_0 = arith.constant 0 : i32
    %c0_i32_1 = arith.constant 0 : i32
    return %c0_i32, %c0_i32_0 : i32, i32
  }
  func.func @transform_3(%arg0: i32) -> (i32, i32) {
    %c0_i32 = arith.constant 0 : i32
    %c0_i32_0 = arith.constant 0 : i32
    %c0_i32_1 = arith.constant 0 : i32
    return %c0_i32, %c0_i32_0 : i32, i32
  }
  func.func @transform_4(%arg0: i32) -> (i32, i32) {
    %c0_i32 = arith.constant 0 : i32
    %c0_i32_0 = arith.constant 0 : i32
    %c0_i32_1 = arith.constant 0 : i32
    return %c0_i32, %c0_i32_0 : i32, i32
  }
  func.func @transform_5(%arg0: i32) -> (i32, i32) {
    %c0_i32 = arith.constant 0 : i32
    %c0_i32_0 = arith.constant 0 : i32
    %c0_i32_1 = arith.constant 0 : i32
    return %c0_i32, %c0_i32_0 : i32, i32
  }
  func.func @transform_6(%arg0: i32) -> (i32, i32) {
    %c0_i32 = arith.constant 0 : i32
    %c0_i32_0 = arith.constant 0 : i32
    %c0_i32_1 = arith.constant 0 : i32
    return %c0_i32, %c0_i32_0 : i32, i32
  }
  func.func @transform_7(%arg0: i32) -> (i32, i32) {
    %c0_i32 = arith.constant 0 : i32
    %c0_i32_0 = arith.constant 0 : i32
    %c0_i32_1 = arith.constant 0 : i32
    return %c0_i32, %c0_i32_0 : i32, i32
  }
  func.func @transform_8(%arg0: i32) -> (i32, i32) {
    %c0_i32 = arith.constant 0 : i32
    %c0_i32_0 = arith.constant 0 : i32
    %c0_i32_1 = arith.constant 0 : i32
    return %c0_i32, %c0_i32_0 : i32, i32
  }
  func.func @transform_9(%arg0: i32) -> i32 {
    %c0_i32 = arith.constant 0 : i32
    %c0_i32_0 = arith.constant 0 : i32
    return %c0_i32 : i32
  }
  func.func @transform_10(%arg0: i32) -> (i32, i32, i32) {
    %c0_i32 = arith.constant 0 : i32
    %c0_i32_0 = arith.constant 0 : i32
    %c0_i32_1 = arith.constant 0 : i32
    return %arg0, %c0_i32, %c0_i32_0 : i32, i32, i32
  }
}

</mosaic_0001>

<llo_original>
// kernel: tpu_custom_call.1
$region0: #{tpu_custom_call.1}
  #allocation0 [shape = 'u32[]', space=smem, size = 0x4, offset = 0x4, fixed_abs, tag = 'smem constant byte address 0x4 - core index']
  #allocation1 [shape = 'u32[144,128]{1,0:T(1,128)}', space=vmem, size = 0x12000, scoped, tag = 'internal scratch']
  #allocation2 [shape = 'f32[1]{0:T(128)S(6)}', space=smem, size = 0x200, scoped, tag = 'scoped memory for tpu_custom_call.1']
  %s0 = inlined_call_operand.hbm [shape: bf16[96,256], index: 0, kind: input, shape index: {}]
  %s1 = inlined_call_operand.hbm [shape: bf16[256,512], index: 1, kind: input, shape index: {}]
  %s2 = inlined_call_operand.vmem [shape: f32[1,512], index: 2, kind: input, shape index: {}]
  %s3 = inlined_call_operand.hbm [shape: bf16[512,128], index: 3, kind: input, shape index: {}]
  %s4 = inlined_call_operand.vmem [shape: f32[1,128], index: 4, kind: input, shape index: {}]
  %s5 = inlined_call_operand.hbm [shape: bf16[128,128], index: 5, kind: input, shape index: {}]
  %s6 = inlined_call_operand.hbm [shape: bf16[128,128], index: 6, kind: input, shape index: {}]
  %s7 = inlined_call_operand.vmem [shape: f32[1,128], index: 7, kind: input, shape index: {}]
  %s8 = inlined_call_operand.vmem [shape: bf16[1,128], index: 8, kind: input, shape index: {}]
  %s9 = inlined_call_operand.<no memory space> [shape: f32[1], index: 9, kind: input, shape index: {}]
  %s10 = inlined_call_operand.hbm [shape: f32[3,1,16], index: 10, kind: output, shape index: {}]
  %s11 = sld [smem:[#allocation0]]
  $region93: #{tpu_custom_call.1} parent=0
    _
  %s13 = ssub.s32 1, %s11
  %s14 = scalar_select 0, %s13, %s11
  %15 = sst [smem:[#allocation2]] %s9
  $region1: #{tpu_custom_call.1} parent=0
    #allocation3 [shape = 'u8[32768]{0}', space=vmem, size = 0x8000, scoped, tag = 'input window, operand 0']
    #allocation4 [shape = 's32[2]{0}', space=sflag, size = 0x8, scoped, tag = 'scoped memory for tpu_custom_call.1']
    #allocation5 [shape = 's32[2]{0}', space=sflag, size = 0x8, scoped, tag = 'scoped memory for tpu_custom_call.1']
    #allocation6 [shape = 'u8[262144]{0}', space=vmem, size = 0x40000, scoped, tag = 'input window, operand 1, single buffered']
    #allocation7 [shape = 's32[1]{0}', space=sflag, size = 0x4, scoped, tag = 'scoped memory for tpu_custom_call.1']
    #allocation8 [shape = 'u8[131072]{0}', space=vmem, size = 0x20000, scoped, tag = 'input window, operand 3, single buffered']
    #allocation9 [shape = 'u8[32768]{0}', space=vmem, size = 0x8000, scoped, tag = 'input window, operand 5, single buffered']
    #allocation10 [shape = 's32[1]{0}', space=sflag, size = 0x4, scoped, tag = 'scoped memory for tpu_custom_call.1']
    #allocation11 [shape = 'u8[32768]{0}', space=vmem, size = 0x8000, scoped, tag = 'input window, operand 6, single buffered']
    #allocation12 [shape = 'u8[1024]{0}', space=vmem, size = 0x400, scoped, tag = 'output window, operand 0']
    %16 = vsyncpa [#allocation4], 0
    %s17 = scalar_lea.sflag [#allocation4], 1
    %18 = vsyncpa %s17, 0
    %19 = vsyncpa [#allocation7], 0
    %20 = vsyncpa [#allocation10], 0
    %21 = vsyncpa [#allocation5], 0
    %s22 = scalar_lea.sflag [#allocation5], 1
    %23 = vsyncpa %s22, 0
    loop: start=0, step=1, limit=5
    $region2: #{tpu_custom_call.1} parent=1 // loop_pre_header
      _
    $region3: #{tpu_custom_call.1} parent=1 // loop_header
      %s25 = sphi 0, %s29
      %p26 = scmp.ge.s32.totalorder %s25, 5
      %s35 = sphi 0, %s37
      %s38 = sphi 0, %s35
      %s39 = sphi 0, %s38
      %s55 = sphi 0, %s39
      %s59 = sphi 0, %s59
      %s61 = sphi 0, %s59
      %s62 = sphi 0, %s61
      %s76 = sphi 0, %s62
      %s80 = sphi 0, %s80
      %s82 = sphi 0, %s80
      %s83 = sphi 0, %s82
      %s97 = sphi 0, %s83
      %s101 = sphi 0, %s101
      %s103 = sphi 0, %s101
      %s104 = sphi 0, %s103
      %s118 = sphi 0, %s104
      %s122 = sphi 0, %s122
      %s124 = sphi 0, %s122
      %s125 = sphi 0, %s124
      %s139 = sphi 0, %s125
      %s143 = sphi 0, %s143
      %s145 = sphi 0, %s143
      %s146 = sphi 0, %s145
      %s160 = sphi 0, %s146
      %s164 = sphi 0, %s164
      %s166 = sphi 0, %s164
      %s167 = sphi 0, %s166
      %s181 = sphi 0, %s167
      %s185 = sphi 0, %s185
      %s187 = sphi 0, %s185
      %s188 = sphi 0, %s187
      %s202 = sphi 0, %s188
      %s206 = sphi 0, %s206
      %s208 = sphi 0, %s206
      %s209 = sphi 0, %s208
      %s223 = sphi 0, %s209
      %s227 = sphi 0, %s227
      %s229 = sphi 0, %s227
      %s230 = sphi 0, %s229
      %s244 = sphi 0, %s230
      %s250 = sphi 0, %s252
      %s253 = sphi 0, %s250
      %s254 = sphi 0, %s253
      %s270 = sphi 0, %s254
    $region4: #{tpu_custom_call.1} parent=1 // loop_header_branch
      %28 = sbr.rel (%p26) target = $region8
    $region5: #{tpu_custom_call.1} parent=1 // loop_body
      %s30 = ssub.s32 %s25, 1
      %s31 = ssub.s32 %s25, 2
      %s32 = sadd.s32 %s25, 1
      %s33 = ssub.s32 %s25, %s32
      %p34 = scmp.eq.s32.totalorder %s33, 0
      %s36 = sadd.s32 %s35, 1
      %s37 = scalar_select %p34, %s35, %s36
      %p40 = pneg %p34
      %p41 = scmp.eq.s32.totalorder %s25, 2
      %p42 = por %p40, %p41
      %p43 = scmp.ne.s32.totalorder %s35, %s38
      %p44 = scmp.eq.s32.totalorder %s25, 0
      %p45 = por %p43, %p44
      %p46 = scmp.ne.s32.totalorder %s35, %s38
      %p47 = scmp.eq.s32.totalorder %s30, 2
      %p48 = por %p46, %p47
      %p49 = scmp.ne.s32.totalorder %s38, %s39
      %p50 = scmp.eq.s32.totalorder %s30, 0
      %p51 = por %p49, %p50
      %p52 = scmp.ne.s32.totalorder %s38, %s39
      %p53 = scmp.eq.s32.totalorder %s31, 2
      %p54 = por %p52, %p53
      %p56 = scmp.ne.s32.totalorder %s39, %s55
      %p57 = scmp.eq.s32.totalorder %s31, 0
      %p58 = por %p56, %p57
      %s60 = sadd.s32 %s59, 1
      %p63 = scmp.eq.s32.totalorder %s25, 2
      %p64 = scmp.ne.s32.totalorder %s59, %s61
      %p65 = scmp.eq.s32.totalorder %s25, 0
      %p66 = por %p64, %p65
      %p67 = scmp.ne.s32.totalorder %s59, %s61
      %p68 = scmp.eq.s32.totalorder %s30, 2
      %p69 = por %p67, %p68
      %p70 = scmp.ne.s32.totalorder %s61, %s62
      %p71 = scmp.eq.s32.totalorder %s30, 0
      %p72 = por %p70, %p71
      %p73 = scmp.ne.s32.totalorder %s61, %s62
      %p74 = scmp.eq.s32.totalorder %s31, 2
      %p75 = por %p73, %p74
      %p77 = scmp.ne.s32.totalorder %s62, %s76
      %p78 = scmp.eq.s32.totalorder %s31, 0
      %p79 = por %p77, %p78
      %s81 = sadd.s32 %s80, 1
      %p84 = scmp.eq.s32.totalorder %s25, 2
      %p85 = scmp.ne.s32.totalorder %s80, %s82
      %p86 = scmp.eq.s32.totalorder %s25, 0
      %p87 = por %p85, %p86
      %p88 = scmp.ne.s32.totalorder %s80, %s82
      %p89 = scmp.eq.s32.totalorder %s30, 2
      %p90 = por %p88, %p89
      %p91 = scmp.ne.s32.totalorder %s82, %s83
      %p92 = scmp.eq.s32.totalorder %s30, 0
      %p93 = por %p91, %p92
      %p94 = scmp.ne.s32.totalorder %s82, %s83
      %p95 = scmp.eq.s32.totalorder %s31, 2
      %p96 = por %p94, %p95
      %p98 = scmp.ne.s32.totalorder %s83, %s97
      %p99 = scmp.eq.s32.totalorder %s31, 0
      %p100 = por %p98, %p99
      %s102 = sadd.s32 %s101, 1
      %p105 = scmp.eq.s32.totalorder %s25, 2
      %p106 = scmp.ne.s32.totalorder %s101, %s103
      %p107 = scmp.eq.s32.totalorder %s25, 0
      %p108 = por %p106, %p107
      %p109 = scmp.ne.s32.totalorder %s101, %s103
      %p110 = scmp.eq.s32.totalorder %s30, 2
      %p111 = por %p109, %p110
      %p112 = scmp.ne.s32.totalorder %s103, %s104
      %p113 = scmp.eq.s32.totalorder %s30, 0
      %p114 = por %p112, %p113
      %p115 = scmp.ne.s32.totalorder %s103, %s104
      %p116 = scmp.eq.s32.totalorder %s31, 2
      %p117 = por %p115, %p116
      %p119 = scmp.ne.s32.totalorder %s104, %s118
      %p120 = scmp.eq.s32.totalorder %s31, 0
      %p121 = por %p119, %p120
      %s123 = sadd.s32 %s122, 1
      %p126 = scmp.eq.s32.totalorder %s25, 2
      %p127 = scmp.ne.s32.totalorder %s122, %s124
      %p128 = scmp.eq.s32.totalorder %s25, 0
      %p129 = por %p127, %p128
      %p130 = scmp.ne.s32.totalorder %s122, %s124
      %p131 = scmp.eq.s32.totalorder %s30, 2
      %p132 = por %p130, %p131
      %p133 = scmp.ne.s32.totalorder %s124, %s125
      %p134 = scmp.eq.s32.totalorder %s30, 0
      %p135 = por %p133, %p134
      %p136 = scmp.ne.s32.totalorder %s124, %s125
      %p137 = scmp.eq.s32.totalorder %s31, 2
      %p138 = por %p136, %p137
      %p140 = scmp.ne.s32.totalorder %s125, %s139
      %p141 = scmp.eq.s32.totalorder %s31, 0
      %p142 = por %p140, %p141
      %s144 = sadd.s32 %s143, 1
      %p147 = scmp.eq.s32.totalorder %s25, 2
      %p148 = scmp.ne.s32.totalorder %s143, %s145
      %p149 = scmp.eq.s32.totalorder %s25, 0
      %p150 = por %p148, %p149
      %p151 = scmp.ne.s32.totalorder %s143, %s145
      %p152 = scmp.eq.s32.totalorder %s30, 2
      %p153 = por %p151, %p152
      %p154 = scmp.ne.s32.totalorder %s145, %s146
      %p155 = scmp.eq.s32.totalorder %s30, 0
      %p156 = por %p154, %p155
      %p157 = scmp.ne.s32.totalorder %s145, %s146
      %p158 = scmp.eq.s32.totalorder %s31, 2
      %p159 = por %p157, %p158
      %p161 = scmp.ne.s32.totalorder %s146, %s160
      %p162 = scmp.eq.s32.totalorder %s31, 0
      %p163 = por %p161, %p162
      %s165 = sadd.s32 %s164, 1
      %p168 = scmp.eq.s32.totalorder %s25, 2
      %p169 = scmp.ne.s32.totalorder %s164, %s166
      %p170 = scmp.eq.s32.totalorder %s25, 0
      %p171 = por %p169, %p170
      %p172 = scmp.ne.s32.totalorder %s164, %s166
      %p173 = scmp.eq.s32.totalorder %s30, 2
      %p174 = por %p172, %p173
      %p175 = scmp.ne.s32.totalorder %s166, %s167
      %p176 = scmp.eq.s32.totalorder %s30, 0
      %p177 = por %p175, %p176
      %p178 = scmp.ne.s32.totalorder %s166, %s167
      %p179 = scmp.eq.s32.totalorder %s31, 2
      %p180 = por %p178, %p179
      %p182 = scmp.ne.s32.totalorder %s167, %s181
      %p183 = scmp.eq.s32.totalorder %s31, 0
      %p184 = por %p182, %p183
      %s186 = sadd.s32 %s185, 1
      %p189 = scmp.eq.s32.totalorder %s25, 2
      %p190 = scmp.ne.s32.totalorder %s185, %s187
      %p191 = scmp.eq.s32.totalorder %s25, 0
      %p192 = por %p190, %p191
      %p193 = scmp.ne.s32.totalorder %s185, %s187
      %p194 = scmp.eq.s32.totalorder %s30, 2
      %p195 = por %p193, %p194
      %p196 = scmp.ne.s32.totalorder %s187, %s188
      %p197 = scmp.eq.s32.totalorder %s30, 0
      %p198 = por %p196, %p197
      %p199 = scmp.ne.s32.totalorder %s187, %s188
      %p200 = scmp.eq.s32.totalorder %s31, 2
      %p201 = por %p199, %p200
      %p203 = scmp.ne.s32.totalorder %s188, %s202
      %p204 = scmp.eq.s32.totalorder %s31, 0
      %p205 = por %p203, %p204
      %s207 = sadd.s32 %s206, 1
      %p210 = scmp.eq.s32.totalorder %s25, 2
      %p211 = scmp.ne.s32.totalorder %s206, %s208
      %p212 = scmp.eq.s32.totalorder %s25, 0
      %p213 = por %p211, %p212
      %p214 = scmp.ne.s32.totalorder %s206, %s208
      %p215 = scmp.eq.s32.totalorder %s30, 2
      %p216 = por %p214, %p215
      %p217 = scmp.ne.s32.totalorder %s208, %s209
      %p218 = scmp.eq.s32.totalorder %s30, 0
      %p219 = por %p217, %p218
      %p220 = scmp.ne.s32.totalorder %s208, %s209
      %p221 = scmp.eq.s32.totalorder %s31, 2
      %p222 = por %p220, %p221
      %p224 = scmp.ne.s32.totalorder %s209, %s223
      %p225 = scmp.eq.s32.totalorder %s31, 0
      %p226 = por %p224, %p225
      %s228 = sadd.s32 %s227, 1
      %p231 = scmp.eq.s32.totalorder %s25, 2
      %p232 = scmp.ne.s32.totalorder %s227, %s229
      %p233 = scmp.eq.s32.totalorder %s25, 0
      %p234 = por %p232, %p233
      %p235 = scmp.ne.s32.totalorder %s227, %s229
      %p236 = scmp.eq.s32.totalorder %s30, 2
      %p237 = por %p235, %p236
      %p238 = scmp.ne.s32.totalorder %s229, %s230
      %p239 = scmp.eq.s32.totalorder %s30, 0
      %p240 = por %p238, %p239
      %p241 = scmp.ne.s32.totalorder %s229, %s230
      %p242 = scmp.eq.s32.totalorder %s31, 2
      %p243 = por %p241, %p242
      %p245 = scmp.ne.s32.totalorder %s230, %s244
      %p246 = scmp.eq.s32.totalorder %s31, 0
      %p247 = por %p245, %p246
      %s248 = ssub.s32 %s25, %s32
      %p249 = scmp.eq.s32.totalorder %s248, 0
      %s251 = sadd.s32 %s250, 1
      %s252 = scalar_select %p249, %s250, %s251
      %p255 = pneg %p249
      %p256 = scmp.eq.s32.totalorder %s25, 2
      %p257 = por %p255, %p256
      %p258 = scmp.ne.s32.totalorder %s250, %s253
      %p259 = scmp.eq.s32.totalorder %s25, 0
      %p260 = por %p258, %p259
      %p261 = scmp.ne.s32.totalorder %s250, %s253
      %p262 = scmp.eq.s32.totalorder %s30, 2
      %p263 = por %p261, %p262
      %p264 = scmp.ne.s32.totalorder %s253, %s254
      %p265 = scmp.eq.s32.totalorder %s30, 0
      %p266 = por %p264, %p265
      %p267 = scmp.ne.s32.totalorder %s253, %s254
      %p268 = scmp.eq.s32.totalorder %s31, 2
      %p269 = por %p267, %p268
      %p271 = scmp.ne.s32.totalorder %s254, %s270
      %p272 = scmp.eq.s32.totalorder %s31, 0
      %p273 = por %p271, %p272
      %p274 = scmp.le.s32.totalorder 1, %s25
      %p275 = scmp.lt.s32.totalorder %s25, 4
      %p276 = pnand %p274, %p275
      %p277 = pneg %p276
      // Predicated region
      $region9: #{tpu_custom_call.1} parent=5 // pred_check
        _
      $region10: #{tpu_custom_call.1} parent=5 // pred_check_branch
        %279 = sbr.rel (%p276) target = $region12
      $region11: #{tpu_custom_call.1} parent=5 // pred_region
        %s280 = ssub.s32 %s25, 1
        // Predicated region
        $region13: #{tpu_custom_call.1} parent=11 // pred_check
          %p281 = pneg %p72
        $region14: #{tpu_custom_call.1} parent=11 // pred_check_branch
          %283 = sbr.rel (%p281) target = $region16
        $region15: #{tpu_custom_call.1} parent=11 // pred_region
          %s285 = ssub.s32 8192, 8192
          %286 = vsyncadd [#allocation7], %s285
          %s287 = sshll.u32 [#allocation6], 4
          %s288 = int_to_ptr.vmem [resolvable:$true] %s287
          %293 = dma.hbm_to_vmem [thread:$0]  %s1, 8192, %s288, [#allocation7], 256, 256, 16
        $region16: #{tpu_custom_call.1} parent=11 // pred_fallthru
          _
        // Predicated region
        $region17: #{tpu_custom_call.1} parent=11 // pred_check
          %p294 = pneg %p93
        $region18: #{tpu_custom_call.1} parent=11 // pred_check_branch
          %296 = sbr.rel (%p294) target = $region20
        $region19: #{tpu_custom_call.1} parent=11 // pred_region
          _
        $region20: #{tpu_custom_call.1} parent=11 // pred_fallthru
          _
        // Predicated region
        $region21: #{tpu_custom_call.1} parent=11 // pred_check
          %p297 = pneg %p114
        $region22: #{tpu_custom_call.1} parent=11 // pred_check_branch
          %299 = sbr.rel (%p297) target = $region24
        $region23: #{tpu_custom_call.1} parent=11 // pred_region
          %s301 = ssub.s32 4096, 4096
          %302 = vsyncadd [#allocation7], %s301
          %s303 = sshll.u32 [#allocation8], 4
          %s304 = int_to_ptr.vmem [resolvable:$true] %s303
          %309 = dma.hbm_to_vmem [thread:$0]  %s3, 4096, %s304, [#allocation7], 64, 64, 4
        $region24: #{tpu_custom_call.1} parent=11 // pred_fallthru
          _
        // Predicated region
        $region25: #{tpu_custom_call.1} parent=11 // pred_check
          %p310 = pneg %p135
        $region26: #{tpu_custom_call.1} parent=11 // pred_check_branch
          %312 = sbr.rel (%p310) target = $region28
        $region27: #{tpu_custom_call.1} parent=11 // pred_region
          _
        $region28: #{tpu_custom_call.1} parent=11 // pred_fallthru
          _
        // Predicated region
        $region29: #{tpu_custom_call.1} parent=11 // pred_check
          %p313 = pneg %p156
        $region30: #{tpu_custom_call.1} parent=11 // pred_check_branch
          %315 = sbr.rel (%p313) target = $region32
        $region31: #{tpu_custom_call.1} parent=11 // pred_region
          %s317 = ssub.s32 1024, 1024
          %318 = vsyncadd [#allocation10], %s317
          %s319 = sshll.u32 [#allocation9], 4
          %s320 = int_to_ptr.vmem [resolvable:$true] %s319
          %325 = dma.hbm_to_vmem [thread:$0]  %s5, 1024, %s320, [#allocation10], 64, 64, 4
        $region32: #{tpu_custom_call.1} parent=11 // pred_fallthru
          _
        // Predicated region
        $region33: #{tpu_custom_call.1} parent=11 // pred_check
          %p326 = pneg %p177
        $region34: #{tpu_custom_call.1} parent=11 // pred_check_branch
          %328 = sbr.rel (%p326) target = $region36
        $region35: #{tpu_custom_call.1} parent=11 // pred_region
          %s330 = ssub.s32 1024, 1024
          %331 = vsyncadd [#allocation10], %s330
          %s332 = sshll.u32 [#allocation11], 4
          %s333 = int_to_ptr.vmem [resolvable:$true] %s332
          %338 = dma.hbm_to_vmem [thread:$0]  %s6, 1024, %s333, [#allocation10], 64, 64, 4
        $region36: #{tpu_custom_call.1} parent=11 // pred_fallthru
          _
        // Predicated region
        $region37: #{tpu_custom_call.1} parent=11 // pred_check
          %p339 = pneg %p198
        $region38: #{tpu_custom_call.1} parent=11 // pred_check_branch
          %341 = sbr.rel (%p339) target = $region40
        $region39: #{tpu_custom_call.1} parent=11 // pred_region
          _
        $region40: #{tpu_custom_call.1} parent=11 // pred_fallthru
          _
        // Predicated region
        $region41: #{tpu_custom_call.1} parent=11 // pred_check
          %p342 = pneg %p219
        $region42: #{tpu_custom_call.1} parent=11 // pred_check_branch
          %344 = sbr.rel (%p342) target = $region44
        $region43: #{tpu_custom_call.1} parent=11 // pred_region
          _
        $region44: #{tpu_custom_call.1} parent=11 // pred_fallthru
          _
        // Predicated region
        $region45: #{tpu_custom_call.1} parent=11 // pred_check
          %p345 = pneg %p240
        $region46: #{tpu_custom_call.1} parent=11 // pred_check_branch
          %347 = sbr.rel (%p345) target = $region48
        $region47: #{tpu_custom_call.1} parent=11 // pred_region
          _
        $region48: #{tpu_custom_call.1} parent=11 // pred_fallthru
          _
      $region12: #{tpu_custom_call.1} parent=5 // pred_fallthru
        _
      %p348 = scmp.lt.s32.totalorder %s25, 3
      // Predicated region
      $region49: #{tpu_custom_call.1} parent=5 // pred_check
        %p349 = pneg %p348
      $region50: #{tpu_custom_call.1} parent=5 // pred_check_branch
        %351 = sbr.rel (%p349) target = $region52
      $region51: #{tpu_custom_call.1} parent=5 // pred_region
        // Predicated region
        $region53: #{tpu_custom_call.1} parent=51 // pred_check
          %p352 = pneg %p45
        $region54: #{tpu_custom_call.1} parent=51 // pred_check_branch
          %354 = sbr.rel (%p352) target = $region56
        $region55: #{tpu_custom_call.1} parent=51 // pred_region
          %s355 = sand.u32 %s35, 1
          %s356 = scalar_lea.sflag [#allocation4], %s355
          %s357 = sand.u32 %s35, 1
          %s358 = smul.addr %s357, 32
          %s359 = scalar_lea.vmem [#allocation3], %s358
          %s360 = smul.u32 4, %s25
          %s362 = ssub.s32 512, 512
          %363 = vsyncadd %s356, %s362
          %s364 = smul.addr %s360, 2
          %s365 = smul.addr %s364, 64
          %s366 = scalar_lea.hbm %s0, %s365
          %s367 = sshll.u32 %s359, 4
          %s368 = int_to_ptr.vmem [resolvable:$true] %s367
          %373 = dma.hbm_to_vmem [thread:$0]  %s366, 512, %s368, %s356, 128, 128, 8
        $region56: #{tpu_custom_call.1} parent=51 // pred_fallthru
          _
      $region52: #{tpu_custom_call.1} parent=5 // pred_fallthru
        _
      %p374 = scmp.le.s32.totalorder 1, %s25
      %p375 = scmp.lt.s32.totalorder %s25, 4
      %p376 = pnand %p374, %p375
      %p377 = pneg %p376
      // Predicated region
      $region57: #{tpu_custom_call.1} parent=5 // pred_check
        _
      $region58: #{tpu_custom_call.1} parent=5 // pred_check_branch
        %379 = sbr.rel (%p376) target = $region60
      $region59: #{tpu_custom_call.1} parent=5 // pred_region
        %s380 = ssub.s32 %s25, 1
        %s381 = sand.u32 %s38, 1
        %s382 = scalar_lea.sflag [#allocation4], %s381
        %s383 = sand.u32 %s38, 1
        %s384 = smul.addr %s383, 32
        %s385 = scalar_lea.vmem [#allocation3], %s384
        // Predicated region
        $region61: #{tpu_custom_call.1} parent=59 // pred_check
          %p386 = pneg %p51
        $region62: #{tpu_custom_call.1} parent=59 // pred_check_branch
          %388 = sbr.rel (%p386) target = $region64
        $region63: #{tpu_custom_call.1} parent=59 // pred_region
          %389 = dma.done %s382, 512
        $region64: #{tpu_custom_call.1} parent=59 // pred_fallthru
          _
        // Predicated region
        $region65: #{tpu_custom_call.1} parent=59 // pred_check
          %p390 = pneg %p72
        $region66: #{tpu_custom_call.1} parent=59 // pred_check_branch
          %392 = sbr.rel (%p390) target = $region68
        $region67: #{tpu_custom_call.1} parent=59 // pred_region
          %393 = dma.done [#allocation7], 8192
        $region68: #{tpu_custom_call.1} parent=59 // pred_fallthru
          _
        // Predicated region
        $region69: #{tpu_custom_call.1} parent=59 // pred_check
          %p394 = pneg %p114
        $region70: #{tpu_custom_call.1} parent=59 // pred_check_branch
          %396 = sbr.rel (%p394) target = $region72
        $region71: #{tpu_custom_call.1} parent=59 // pred_region
          %397 = dma.done [#allocation7], 4096
        $region72: #{tpu_custom_call.1} parent=59 // pred_fallthru
          _
        // Predicated region
        $region73: #{tpu_custom_call.1} parent=59 // pred_check
          %p398 = pneg %p156
        $region74: #{tpu_custom_call.1} parent=59 // pred_check_branch
          %400 = sbr.rel (%p398) target = $region76
        $region75: #{tpu_custom_call.1} parent=59 // pred_region
          %401 = dma.done [#allocation10], 1024
        $region76: #{tpu_custom_call.1} parent=59 // pred_fallthru
          _
        // Predicated region
        $region77: #{tpu_custom_call.1} parent=59 // pred_check
          %p402 = pneg %p177
        $region78: #{tpu_custom_call.1} parent=59 // pred_check_branch
          %404 = sbr.rel (%p402) target = $region80
        $region79: #{tpu_custom_call.1} parent=59 // pred_region
          %405 = dma.done [#allocation10], 1024
        $region80: #{tpu_custom_call.1} parent=59 // pred_fallthru
          _
        %s406 = sand.u32 %s38, 1
        %s407 = scalar_lea.sflag [#allocation4], %s406
        %s408 = sand.u32 %s38, 1
        %s409 = smul.addr %s408, 32
        %s410 = scalar_lea.vmem [#allocation3], %s409
        %p411 = pneg %p51
        %p412 = pneg %p48
        %p413 = pneg %p72
        %p414 = pneg %p69
        %p415 = pneg %p93
        %p416 = pneg %p90
        %p417 = pneg %p114
        %p418 = pneg %p111
        %p419 = pneg %p135
        %p420 = pneg %p132
        %p421 = pneg %p156
        %p422 = pneg %p153
        %p423 = pneg %p177
        %p424 = pneg %p174
        %p425 = pneg %p198
        %p426 = pneg %p195
        %p427 = pneg %p219
        %p428 = pneg %p216
        %p429 = pneg %p240
        %p430 = pneg %p237
        %p431 = pneg %p266
        %p432 = pneg %p263
        %s433 = sand.u32 %s253, 1
        %s434 = scalar_lea.sflag [#allocation5], %s433
        %s435 = sand.u32 %s253, 1
        %s436 = scalar_lea.vmem [#allocation12], %s435
        %s437 = smul.u32 4, %s30
        %v439 = vld [vmem:[%s385] sm:$0xff]
        %v440 = vld [vmem:[%s385 + $0x8] sm:$0xff]
        %v441 = vld [vmem:[%s385 + $0x10] sm:$0xff]
        %v442 = vld [vmem:[%s385 + $0x18] sm:$0xff]
        %v443 = vld [vmem:[#allocation6] sm:$0xff]
        %v444 = vld [vmem:[#allocation6 + $0x8] sm:$0xff]
        %v445 = vld [vmem:[#allocation6 + $0x10] sm:$0xff]
        %v446 = vld [vmem:[#allocation6 + $0x18] sm:$0xff]
        %v447 = vld [vmem:[#allocation6 + $0x20] sm:$0xff]
        %v448 = vld [vmem:[#allocation6 + $0x28] sm:$0xff]
        %v449 = vld [vmem:[#allocation6 + $0x30] sm:$0xff]
        %v450 = vld [vmem:[#allocation6 + $0x38] sm:$0xff]
        %v451 = vld [vmem:[#allocation6 + $0x40] sm:$0xff]
        %v452 = vld [vmem:[#allocation6 + $0x48] sm:$0xff]
        %v453 = vld [vmem:[#allocation6 + $0x50] sm:$0xff]
        %v454 = vld [vmem:[#allocation6 + $0x58] sm:$0xff]
        %v455 = vld [vmem:[#allocation6 + $0x60] sm:$0xff]
        %v456 = vld [vmem:[#allocation6 + $0x68] sm:$0xff]
        %v457 = vld [vmem:[#allocation6 + $0x70] sm:$0xff]
        %v458 = vld [vmem:[#allocation6 + $0x78] sm:$0xff]
        %v459 = vld [vmem:[#allocation6 + $0x80] sm:$0xff]
        %v460 = vld [vmem:[#allocation6 + $0x88] sm:$0xff]
        %v461 = vld [vmem:[#allocation6 + $0x90] sm:$0xff]
        %v462 = vld [vmem:[#allocation6 + $0x98] sm:$0xff]
        %v463 = vld [vmem:[#allocation6 + $0xa0] sm:$0xff]
        %v464 = vld [vmem:[#allocation6 + $0xa8] sm:$0xff]
        %v465 = vld [vmem:[#allocation6 + $0xb0] sm:$0xff]
        %v466 = vld [vmem:[#allocation6 + $0xb8] sm:$0xff]
        %v467 = vld [vmem:[#allocation6 + $0xc0] sm:$0xff]
        %v468 = vld [vmem:[#allocation6 + $0xc8] sm:$0xff]
        %v469 = vld [vmem:[#allocation6 + $0xd0] sm:$0xff]
        %v470 = vld [vmem:[#allocation6 + $0xd8] sm:$0xff]
        %v471 = vld [vmem:[#allocation6 + $0xe0] sm:$0xff]
        %v472 = vld [vmem:[#allocation6 + $0xe8] sm:$0xff]
        %v473 = vld [vmem:[#allocation6 + $0xf0] sm:$0xff]
        %v474 = vld [vmem:[#allocation6 + $0xf8] sm:$0xff]
        %v475 = vld [vmem:[#allocation6 + $0x100] sm:$0xff]
        %v476 = vld [vmem:[#allocation6 + $0x108] sm:$0xff]
        %v477 = vld [vmem:[#allocation6 + $0x110] sm:$0xff]
        %v478 = vld [vmem:[#allocation6 + $0x118] sm:$0xff]
        %v479 = vld [vmem:[#allocation6 + $0x120] sm:$0xff]
        %v480 = vld [vmem:[#allocation6 + $0x128] sm:$0xff]
        %v481 = vld [vmem:[#allocation6 + $0x130] sm:$0xff]
        %v482 = vld [vmem:[#allocation6 + $0x138] sm:$0xff]
        %v483 = vld [vmem:[#allocation6 + $0x140] sm:$0xff]
        %v484 = vld [vmem:[#allocation6 + $0x148] sm:$0xff]
        %v485 = vld [vmem:[#allocation6 + $0x150] sm:$0xff]
        %v486 = vld [vmem:[#allocation6 + $0x158] sm:$0xff]
        %v487 = vld [vmem:[#allocation6 + $0x160] sm:$0xff]
        %v488 = vld [vmem:[#allocation6 + $0x168] sm:$0xff]
        %v489 = vld [vmem:[#allocation6 + $0x170] sm:$0xff]
        %v490 = vld [vmem:[#allocation6 + $0x178] sm:$0xff]
        %v491 = vld [vmem:[#allocation6 + $0x180] sm:$0xff]
        %v492 = vld [vmem:[#allocation6 + $0x188] sm:$0xff]
        %v493 = vld [vmem:[#allocation6 + $0x190] sm:$0xff]
        %v494 = vld [vmem:[#allocation6 + $0x198] sm:$0xff]
        %v495 = vld [vmem:[#allocation6 + $0x1a0] sm:$0xff]
        %v496 = vld [vmem:[#allocation6 + $0x1a8] sm:$0xff]
        %v497 = vld [vmem:[#allocation6 + $0x1b0] sm:$0xff]
        %v498 = vld [vmem:[#allocation6 + $0x1b8] sm:$0xff]
        %v499 = vld [vmem:[#allocation6 + $0x1c0] sm:$0xff]
        %v500 = vld [vmem:[#allocation6 + $0x1c8] sm:$0xff]
        %v501 = vld [vmem:[#allocation6 + $0x1d0] sm:$0xff]
        %v502 = vld [vmem:[#allocation6 + $0x1d8] sm:$0xff]
        %v503 = vld [vmem:[#allocation6 + $0x1e0] sm:$0xff]
        %v504 = vld [vmem:[#allocation6 + $0x1e8] sm:$0xff]
        %v505 = vld [vmem:[#allocation6 + $0x1f0] sm:$0xff]
        %v506 = vld [vmem:[#allocation6 + $0x1f8] sm:$0xff]
        %v507 = vld [vmem:[%s2] sm:$0xf]
        %v509 = vlaneseq
        %v510 = vshrl.u32 %v509, 7
        %v511 = vsub.s32 0, %v510
        %v512 = vrot.slane %v507, %v511
        %v513 = vlaneseq
        %v514 = vshrl.u32 %v513, 7
        %v515 = vsub.s32 1, %v514
        %v516 = vrot.slane %v507, %v515
        %v517 = vlaneseq
        %v518 = vshrl.u32 %v517, 7
        %v519 = vsub.s32 2, %v518
        %v520 = vrot.slane %v507, %v519
        %v521 = vlaneseq
        %v522 = vshrl.u32 %v521, 7
        %v523 = vsub.s32 3, %v522
        %v524 = vrot.slane %v507, %v523
        %v533 = vunpack.c.l.b16 %v439
        %v534 = vunpack.c.h.b16 %v439
        %v535 = vunpack.c.l.b16 %v440
        %v536 = vunpack.c.h.b16 %v440
        %v537 = vunpack.c.l.b16 %v441
        %v538 = vunpack.c.h.b16 %v441
        %v539 = vunpack.c.l.b16 %v442
        %v540 = vunpack.c.h.b16 %v442
        %v541 = vpack.c.b16 %v535, %v533
        %v542 = vpack.c.b16 %v536, %v534
        %v543 = vpack.c.b16 %v539, %v537
        %v544 = vpack.c.b16 %v540, %v538
        %v613 = vunpack.c.l.b16 %v443
        %v614 = vunpack.c.h.b16 %v443
        %v615 = vunpack.c.l.b16 %v444
        %v616 = vunpack.c.h.b16 %v444
        %v617 = vunpack.c.l.b16 %v445
        %v618 = vunpack.c.h.b16 %v445
        %v619 = vunpack.c.l.b16 %v446
        %v620 = vunpack.c.h.b16 %v446
        %v621 = vunpack.c.l.b16 %v447
        %v622 = vunpack.c.h.b16 %v447
        %v623 = vunpack.c.l.b16 %v448
        %v624 = vunpack.c.h.b16 %v448
        %v625 = vunpack.c.l.b16 %v449
        %v626 = vunpack.c.h.b16 %v449
        %v627 = vunpack.c.l.b16 %v450
        %v628 = vunpack.c.h.b16 %v450
        %v629 = vunpack.c.l.b16 %v451
        %v630 = vunpack.c.h.b16 %v451
        %v631 = vunpack.c.l.b16 %v452
        %v632 = vunpack.c.h.b16 %v452
        %v633 = vunpack.c.l.b16 %v453
        %v634 = vunpack.c.h.b16 %v453
        %v635 = vunpack.c.l.b16 %v454
        %v636 = vunpack.c.h.b16 %v454
        %v637 = vunpack.c.l.b16 %v455
        %v638 = vunpack.c.h.b16 %v455
        %v639 = vunpack.c.l.b16 %v456
        %v640 = vunpack.c.h.b16 %v456
        %v641 = vunpack.c.l.b16 %v457
        %v642 = vunpack.c.h.b16 %v457
        %v643 = vunpack.c.l.b16 %v458
        %v644 = vunpack.c.h.b16 %v458
        %v645 = vunpack.c.l.b16 %v459
        %v646 = vunpack.c.h.b16 %v459
        %v647 = vunpack.c.l.b16 %v460
        %v648 = vunpack.c.h.b16 %v460
        %v649 = vunpack.c.l.b16 %v461
        %v650 = vunpack.c.h.b16 %v461
        %v651 = vunpack.c.l.b16 %v462
        %v652 = vunpack.c.h.b16 %v462
        %v653 = vunpack.c.l.b16 %v463
        %v654 = vunpack.c.h.b16 %v463
        %v655 = vunpack.c.l.b16 %v464
        %v656 = vunpack.c.h.b16 %v464
        %v657 = vunpack.c.l.b16 %v465
        %v658 = vunpack.c.h.b16 %v465
        %v659 = vunpack.c.l.b16 %v466
        %v660 = vunpack.c.h.b16 %v466
        %v661 = vunpack.c.l.b16 %v467
        %v662 = vunpack.c.h.b16 %v467
        %v663 = vunpack.c.l.b16 %v468
        %v664 = vunpack.c.h.b16 %v468
        %v665 = vunpack.c.l.b16 %v469
        %v666 = vunpack.c.h.b16 %v469
        %v667 = vunpack.c.l.b16 %v470
        %v668 = vunpack.c.h.b16 %v470
        %v669 = vunpack.c.l.b16 %v471
        %v670 = vunpack.c.h.b16 %v471
        %v671 = vunpack.c.l.b16 %v472
        %v672 = vunpack.c.h.b16 %v472
        %v673 = vunpack.c.l.b16 %v473
        %v674 = vunpack.c.h.b16 %v473
        %v675 = vunpack.c.l.b16 %v474
        %v676 = vunpack.c.h.b16 %v474
        %v677 = vunpack.c.l.b16 %v475
        %v678 = vunpack.c.h.b16 %v475
        %v679 = vunpack.c.l.b16 %v476
        %v680 = vunpack.c.h.b16 %v476
        %v681 = vunpack.c.l.b16 %v477
        %v682 = vunpack.c.h.b16 %v477
        %v683 = vunpack.c.l.b16 %v478
        %v684 = vunpack.c.h.b16 %v478
        %v685 = vunpack.c.l.b16 %v479
        %v686 = vunpack.c.h.b16 %v479
        %v687 = vunpack.c.l.b16 %v480
        %v688 = vunpack.c.h.b16 %v480
        %v689 = vunpack.c.l.b16 %v481
        %v690 = vunpack.c.h.b16 %v481
        %v691 = vunpack.c.l.b16 %v482
        %v692 = vunpack.c.h.b16 %v482
        %v693 = vunpack.c.l.b16 %v483
        %v694 = vunpack.c.h.b16 %v483
        %v695 = vunpack.c.l.b16 %v484
        %v696 = vunpack.c.h.b16 %v484
        %v697 = vunpack.c.l.b16 %v485
        %v698 = vunpack.c.h.b16 %v485
        %v699 = vunpack.c.l.b16 %v486
        %v700 = vunpack.c.h.b16 %v486
        %v701 = vunpack.c.l.b16 %v487
        %v702 = vunpack.c.h.b16 %v487
        %v703 = vunpack.c.l.b16 %v488
        %v704 = vunpack.c.h.b16 %v488
        %v705 = vunpack.c.l.b16 %v489
        %v706 = vunpack.c.h.b16 %v489
        %v707 = vunpack.c.l.b16 %v490
        %v708 = vunpack.c.h.b16 %v490
        %v709 = vunpack.c.l.b16 %v491
        %v710 = vunpack.c.h.b16 %v491
        %v711 = vunpack.c.l.b16 %v492
        %v712 = vunpack.c.h.b16 %v492
        %v713 = vunpack.c.l.b16 %v493
        %v714 = vunpack.c.h.b16 %v493
        %v715 = vunpack.c.l.b16 %v494
        %v716 = vunpack.c.h.b16 %v494
        %v717 = vunpack.c.l.b16 %v495
        %v718 = vunpack.c.h.b16 %v495
        %v719 = vunpack.c.l.b16 %v496
        %v720 = vunpack.c.h.b16 %v496
        %v721 = vunpack.c.l.b16 %v497
        %v722 = vunpack.c.h.b16 %v497
        %v723 = vunpack.c.l.b16 %v498
        %v724 = vunpack.c.h.b16 %v498
        %v725 = vunpack.c.l.b16 %v499
        %v726 = vunpack.c.h.b16 %v499
        %v727 = vunpack.c.l.b16 %v500
        %v728 = vunpack.c.h.b16 %v500
        %v729 = vunpack.c.l.b16 %v501
        %v730 = vunpack.c.h.b16 %v501
        %v731 = vunpack.c.l.b16 %v502
        %v732 = vunpack.c.h.b16 %v502
        %v733 = vunpack.c.l.b16 %v503
        %v734 = vunpack.c.h.b16 %v503
        %v735 = vunpack.c.l.b16 %v504
        %v736 = vunpack.c.h.b16 %v504
        %v737 = vunpack.c.l.b16 %v505
        %v738 = vunpack.c.h.b16 %v505
        %v739 = vunpack.c.l.b16 %v506
        %v740 = vunpack.c.h.b16 %v506
        %v741 = vpack.c.b16 %v617, %v613
        %v742 = vpack.c.b16 %v618, %v614
        %v743 = vpack.c.b16 %v619, %v615
        %v744 = vpack.c.b16 %v620, %v616
        %v745 = vpack.c.b16 %v625, %v621
        %v746 = vpack.c.b16 %v626, %v622
        %v747 = vpack.c.b16 %v627, %v623
        %v748 = vpack.c.b16 %v628, %v624
        %v749 = vpack.c.b16 %v633, %v629
        %v750 = vpack.c.b16 %v634, %v630
        %v751 = vpack.c.b16 %v635, %v631
        %v752 = vpack.c.b16 %v636, %v632
        %v753 = vpack.c.b16 %v641, %v637
        %v754 = vpack.c.b16 %v642, %v638
        %v755 = vpack.c.b16 %v643, %v639
        %v756 = vpack.c.b16 %v644, %v640
        %v757 = vpack.c.b16 %v649, %v645
        %v758 = vpack.c.b16 %v650, %v646
        %v759 = vpack.c.b16 %v651, %v647
        %v760 = vpack.c.b16 %v652, %v648
        %v761 = vpack.c.b16 %v657, %v653
        %v762 = vpack.c.b16 %v658, %v654
        %v763 = vpack.c.b16 %v659, %v655
        %v764 = vpack.c.b16 %v660, %v656
        %v765 = vpack.c.b16 %v665, %v661
        %v766 = vpack.c.b16 %v666, %v662
        %v767 = vpack.c.b16 %v667, %v663
        %v768 = vpack.c.b16 %v668, %v664
        %v769 = vpack.c.b16 %v673, %v669
        %v770 = vpack.c.b16 %v674, %v670
        %v771 = vpack.c.b16 %v675, %v671
        %v772 = vpack.c.b16 %v676, %v672
        %v773 = vpack.c.b16 %v681, %v677
        %v774 = vpack.c.b16 %v682, %v678
        %v775 = vpack.c.b16 %v683, %v679
        %v776 = vpack.c.b16 %v684, %v680
        %v777 = vpack.c.b16 %v689, %v685
        %v778 = vpack.c.b16 %v690, %v686
        %v779 = vpack.c.b16 %v691, %v687
        %v780 = vpack.c.b16 %v692, %v688
        %v781 = vpack.c.b16 %v697, %v693
        %v782 = vpack.c.b16 %v698, %v694
        %v783 = vpack.c.b16 %v699, %v695
        %v784 = vpack.c.b16 %v700, %v696
        %v785 = vpack.c.b16 %v705, %v701
        %v786 = vpack.c.b16 %v706, %v702
        %v787 = vpack.c.b16 %v707, %v703
        %v788 = vpack.c.b16 %v708, %v704
        %v789 = vpack.c.b16 %v713, %v709
        %v790 = vpack.c.b16 %v714, %v710
        %v791 = vpack.c.b16 %v715, %v711
        %v792 = vpack.c.b16 %v716, %v712
        %v793 = vpack.c.b16 %v721, %v717
        %v794 = vpack.c.b16 %v722, %v718
        %v795 = vpack.c.b16 %v723, %v719
        %v796 = vpack.c.b16 %v724, %v720
        %v797 = vpack.c.b16 %v729, %v725
        %v798 = vpack.c.b16 %v730, %v726
        %v799 = vpack.c.b16 %v731, %v727
        %v800 = vpack.c.b16 %v732, %v728
        %v801 = vpack.c.b16 %v737, %v733
        %v802 = vpack.c.b16 %v738, %v734
        %v803 = vpack.c.b16 %v739, %v735
        %v804 = vpack.c.b16 %v740, %v736
        %869 = vmatprep.subr.bf16.mxu0 %v742
        %870 = vmatpush1.bf16.msra.mxu0 %v741
        %871 = vmatprep.subr.bf16.mxu0 %v746
        %872 = vmatpush1.bf16.msra.mxu0 %v745
        %873 = vmatprep.subr.bf16.mxu0 %v750
        %874 = vmatpush1.bf16.msra.mxu0 %v749
        %875 = vmatprep.subr.bf16.mxu0 %v754
        %876 = vmatpush1.bf16.msra.mxu0 %v753
        %877 = vmatprep.subr.bf16.mxu0 %v758
        %878 = vmatpush1.bf16.msra.mxu0 %v757
        %879 = vmatprep.subr.bf16.mxu0 %v762
        %880 = vmatpush1.bf16.msra.mxu0 %v761
        %881 = vmatprep.subr.bf16.mxu0 %v766
        %882 = vmatpush1.bf16.msra.mxu0 %v765
        %883 = vmatprep.subr.bf16.mxu0 %v770
        %884 = vmatpush1.bf16.msra.mxu0 %v769
        %885 = vmatprep.subr.bf16.mxu0 %v774
        %886 = vmatpush1.bf16.msra.mxu0 %v773
        %887 = vmatprep.subr.bf16.mxu0 %v778
        %888 = vmatpush1.bf16.msra.mxu0 %v777
        %889 = vmatprep.subr.bf16.mxu0 %v782
        %890 = vmatpush1.bf16.msra.mxu0 %v781
        %891 = vmatprep.subr.bf16.mxu0 %v786
        %892 = vmatpush1.bf16.msra.mxu0 %v785
        %893 = vmatprep.subr.bf16.mxu0 %v790
        %894 = vmatpush1.bf16.msra.mxu0 %v789
        %895 = vmatprep.subr.bf16.mxu0 %v794
        %896 = vmatpush1.bf16.msra.mxu0 %v793
        %897 = vmatprep.subr.bf16.mxu0 %v798
        %898 = vmatpush1.bf16.msra.mxu0 %v797
        %899 = vmatprep.subr.bf16.mxu0 %v802
        %900 = vmatpush1.bf16.msra.mxu0 %v801
        %901 = vmatprep.mubr.bf16.mxu0 %v542
        %902 = vmatmul.mubr.bf16.gmra.mrb[0].mxu0 %v541
        %v903 = vpop.f32.mrb[0].mxu0
        %v904 = vadd.f32 %v512, %v903
        %v905 = vpop.f32.mrb[0].mxu0
        %v906 = vadd.f32 %v516, %v905
        %v907 = vpop.f32.mrb[0].mxu0
        %v908 = vadd.f32 %v512, %v907
        %v909 = vpop.f32.mrb[0].mxu0
        %v910 = vadd.f32 %v516, %v909
        %911 = vmatprep.mubr.bf16.mxu0 %v544
        %912 = vmatmul.mubr.bf16.gmra.mrb[0].mxu0 %v543
        %v913 = vpop.f32.mrb[0].mxu0
        %v914 = vadd.f32 %v512, %v913
        %v915 = vpop.f32.mrb[0].mxu0
        %v916 = vadd.f32 %v516, %v915
        %v917 = vpop.f32.mrb[0].mxu0
        %v918 = vadd.f32 %v512, %v917
        %v919 = vpop.f32.mrb[0].mxu0
        %v920 = vadd.f32 %v516, %v919
        %921 = vdwg.mxu0
        %922 = vmatprep.subr.bf16.mxu0 %v744
        %923 = vmatpush1.bf16.msra.mxu0 %v743
        %924 = vmatprep.subr.bf16.mxu0 %v748
        %925 = vmatpush1.bf16.msra.mxu0 %v747
        %926 = vmatprep.subr.bf16.mxu0 %v752
        %927 = vmatpush1.bf16.msra.mxu0 %v751
        %928 = vmatprep.subr.bf16.mxu0 %v756
        %929 = vmatpush1.bf16.msra.mxu0 %v755
        %930 = vmatprep.subr.bf16.mxu0 %v760
        %931 = vmatpush1.bf16.msra.mxu0 %v759
        %932 = vmatprep.subr.bf16.mxu0 %v764
        %933 = vmatpush1.bf16.msra.mxu0 %v763
        %934 = vmatprep.subr.bf16.mxu0 %v768
        %935 = vmatpush1.bf16.msra.mxu0 %v767
        %936 = vmatprep.subr.bf16.mxu0 %v772
        %937 = vmatpush1.bf16.msra.mxu0 %v771
        %938 = vmatprep.subr.bf16.mxu0 %v776
        %939 = vmatpush1.bf16.msra.mxu0 %v775
        %940 = vmatprep.subr.bf16.mxu0 %v780
        %941 = vmatpush1.bf16.msra.mxu0 %v779
        %942 = vmatprep.subr.bf16.mxu0 %v784
        %943 = vmatpush1.bf16.msra.mxu0 %v783
        %944 = vmatprep.subr.bf16.mxu0 %v788
        %945 = vmatpush1.bf16.msra.mxu0 %v787
        %946 = vmatprep.subr.bf16.mxu0 %v792
        %947 = vmatpush1.bf16.msra.mxu0 %v791
        %948 = vmatprep.subr.bf16.mxu0 %v796
        %949 = vmatpush1.bf16.msra.mxu0 %v795
        %950 = vmatprep.subr.bf16.mxu0 %v800
        %951 = vmatpush1.bf16.msra.mxu0 %v799
        %952 = vmatprep.subr.bf16.mxu0 %v804
        %953 = vmatpush1.bf16.msra.mxu0 %v803
        %954 = vmatprep.mubr.bf16.mxu0 %v542
        %955 = vmatmul.mubr.bf16.gmra.mrb[0].mxu0 %v541
        %v956 = vpop.f32.mrb[0].mxu0
        %v957 = vadd.f32 %v520, %v956
        %v958 = vpop.f32.mrb[0].mxu0
        %v959 = vadd.f32 %v524, %v958
        %v960 = vpop.f32.mrb[0].mxu0
        %v961 = vadd.f32 %v520, %v960
        %v962 = vpop.f32.mrb[0].mxu0
        %v963 = vadd.f32 %v524, %v962
        %964 = vmatprep.mubr.bf16.mxu0 %v544
        %965 = vmatmul.mubr.bf16.gmra.mrb[0].mxu0 %v543
        %v966 = vpop.f32.mrb[0].mxu0
        %v967 = vadd.f32 %v520, %v966
        %v968 = vpop.f32.mrb[0].mxu0
        %v969 = vadd.f32 %v524, %v968
        %v970 = vpop.f32.mrb[0].mxu0
        %v971 = vadd.f32 %v520, %v970
        %v972 = vpop.f32.mrb[0].mxu0
        %v973 = vadd.f32 %v524, %v972
        %974 = vdwg.mxu0
        %v975 = vmax.f32 %v904, 0.0
        %v976 = vmax.f32 %v906, 0.0
        %v977 = vmax.f32 %v957, 0.0
        %v978 = vmax.f32 %v959, 0.0
        %v979 = vmax.f32 %v908, 0.0
        %v980 = vmax.f32 %v910, 0.0
        %v981 = vmax.f32 %v961, 0.0
        %v982 = vmax.f32 %v963, 0.0
        %v983 = vmax.f32 %v914, 0.0
        %v984 = vmax.f32 %v916, 0.0
        %v985 = vmax.f32 %v967, 0.0
        %v986 = vmax.f32 %v969, 0.0
        %v987 = vmax.f32 %v918, 0.0
        %v988 = vmax.f32 %v920, 0.0
        %v989 = vmax.f32 %v971, 0.0
        %v990 = vmax.f32 %v973, 0.0
        %v991 = vpack.c.bf16 %v979, %v975
        %v992 = vpack.c.bf16 %v980, %v976
        %v993 = vpack.c.bf16 %v981, %v977
        %v994 = vpack.c.bf16 %v982, %v978
        %v995 = vpack.c.bf16 %v987, %v983
        %v996 = vpack.c.bf16 %v988, %v984
        %v997 = vpack.c.bf16 %v989, %v985
        %v998 = vpack.c.bf16 %v990, %v986
        %v999 = vld [vmem:[#allocation8] sm:$0xf]
        %v1000 = vld [vmem:[#allocation8 + $0x4] sm:$0xf]
        %v1001 = vld [vmem:[#allocation8 + $0x8] sm:$0xf]
        %v1002 = vld [vmem:[#allocation8 + $0xc] sm:$0xf]
        %v1003 = vld [vmem:[#allocation8 + $0x10] sm:$0xf]
        %v1004 = vld [vmem:[#allocation8 + $0x14] sm:$0xf]
        %v1005 = vld [vmem:[#allocation8 + $0x18] sm:$0xf]
        %v1006 = vld [vmem:[#allocation8 + $0x1c] sm:$0xf]
        %v1007 = vld [vmem:[#allocation8 + $0x20] sm:$0xf]
        %v1008 = vld [vmem:[#allocation8 + $0x24] sm:$0xf]
        %v1009 = vld [vmem:[#allocation8 + $0x28] sm:$0xf]
        %v1010 = vld [vmem:[#allocation8 + $0x2c] sm:$0xf]
        %v1011 = vld [vmem:[#allocation8 + $0x30] sm:$0xf]
        %v1012 = vld [vmem:[#allocation8 + $0x34] sm:$0xf]
        %v1013 = vld [vmem:[#allocation8 + $0x38] sm:$0xf]
        %v1014 = vld [vmem:[#allocation8 + $0x3c] sm:$0xf]
        %v1015 = vld [vmem:[#allocation8 + $0x40] sm:$0xf]
        %v1016 = vld [vmem:[#allocation8 + $0x44] sm:$0xf]
        %v1017 = vld [vmem:[#allocation8 + $0x48] sm:$0xf]
        %v1018 = vld [vmem:[#allocation8 + $0x4c] sm:$0xf]
        %v1019 = vld [vmem:[#allocation8 + $0x50] sm:$0xf]
        %v1020 = vld [vmem:[#allocation8 + $0x54] sm:$0xf]
        %v1021 = vld [vmem:[#allocation8 + $0x58] sm:$0xf]
        %v1022 = vld [vmem:[#allocation8 + $0x5c] sm:$0xf]
        %v1023 = vld [vmem:[#allocation8 + $0x60] sm:$0xf]
        %v1024 = vld [vmem:[#allocation8 + $0x64] sm:$0xf]
        %v1025 = vld [vmem:[#allocation8 + $0x68] sm:$0xf]
        %v1026 = vld [vmem:[#allocation8 + $0x6c] sm:$0xf]
        %v1027 = vld [vmem:[#allocation8 + $0x70] sm:$0xf]
        %v1028 = vld [vmem:[#allocation8 + $0x74] sm:$0xf]
        %v1029 = vld [vmem:[#allocation8 + $0x78] sm:$0xf]
        %v1030 = vld [vmem:[#allocation8 + $0x7c] sm:$0xf]
        %v1031 = vld [vmem:[#allocation8 + $0x80] sm:$0xf]
        %v1032 = vld [vmem:[#allocation8 + $0x84] sm:$0xf]
        %v1033 = vld [vmem:[#allocation8 + $0x88] sm:$0xf]
        %v1034 = vld [vmem:[#allocation8 + $0x8c] sm:$0xf]
        %v1035 = vld [vmem:[#allocation8 + $0x90] sm:$0xf]
        %v1036 = vld [vmem:[#allocation8 + $0x94] sm:$0xf]
        %v1037 = vld [vmem:[#allocation8 + $0x98] sm:$0xf]
        %v1038 = vld [vmem:[#allocation8 + $0x9c] sm:$0xf]
        %v1039 = vld [vmem:[#allocation8 + $0xa0] sm:$0xf]
        %v1040 = vld [vmem:[#allocation8 + $0xa4] sm:$0xf]
        %v1041 = vld [vmem:[#allocation8 + $0xa8] sm:$0xf]
        %v1042 = vld [vmem:[#allocation8 + $0xac] sm:$0xf]
        %v1043 = vld [vmem:[#allocation8 + $0xb0] sm:$0xf]
        %v1044 = vld [vmem:[#allocation8 + $0xb4] sm:$0xf]
        %v1045 = vld [vmem:[#allocation8 + $0xb8] sm:$0xf]
        %v1046 = vld [vmem:[#allocation8 + $0xbc] sm:$0xf]
        %v1047 = vld [vmem:[#allocation8 + $0xc0] sm:$0xf]
        %v1048 = vld [vmem:[#allocation8 + $0xc4] sm:$0xf]
        %v1049 = vld [vmem:[#allocation8 + $0xc8] sm:$0xf]
        %v1050 = vld [vmem:[#allocation8 + $0xcc] sm:$0xf]
        %v1051 = vld [vmem:[#allocation8 + $0xd0] sm:$0xf]
        %v1052 = vld [vmem:[#allocation8 + $0xd4] sm:$0xf]
        %v1053 = vld [vmem:[#allocation8 + $0xd8] sm:$0xf]
        %v1054 = vld [vmem:[#allocation8 + $0xdc] sm:$0xf]
        %v1055 = vld [vmem:[#allocation8 + $0xe0] sm:$0xf]
        %v1056 = vld [vmem:[#allocation8 + $0xe4] sm:$0xf]
        %v1057 = vld [vmem:[#allocation8 + $0xe8] sm:$0xf]
        %v1058 = vld [vmem:[#allocation8 + $0xec] sm:$0xf]
        %v1059 = vld [vmem:[#allocation8 + $0xf0] sm:$0xf]
        %v1060 = vld [vmem:[#allocation8 + $0xf4] sm:$0xf]
        %v1061 = vld [vmem:[#allocation8 + $0xf8] sm:$0xf]
        %v1062 = vld [vmem:[#allocation8 + $0xfc] sm:$0xf]
        %v1063 = vld [vmem:[%s4] sm:$0x1]
        %v1065 = vlaneseq
        %v1066 = vshrl.u32 %v1065, 7
        %v1067 = vsub.s32 0, %v1066
        %v1068 = vrot.slane %v1063, %v1067
        %v1134 = vunpack.c.l.b16 %v999
        %v1135 = vunpack.c.l.b16 %v1000
        %v1136 = vunpack.c.l.b16 %v1001
        %v1137 = vunpack.c.l.b16 %v1002
        %v1138 = vunpack.c.l.b16 %v1003
        %v1139 = vunpack.c.l.b16 %v1004
        %v1140 = vunpack.c.l.b16 %v1005
        %v1141 = vunpack.c.l.b16 %v1006
        %v1142 = vunpack.c.l.b16 %v1007
        %v1143 = vunpack.c.l.b16 %v1008
        %v1144 = vunpack.c.l.b16 %v1009
        %v1145 = vunpack.c.l.b16 %v1010
        %v1146 = vunpack.c.l.b16 %v1011
        %v1147 = vunpack.c.l.b16 %v1012
        %v1148 = vunpack.c.l.b16 %v1013
        %v1149 = vunpack.c.l.b16 %v1014
        %v1150 = vunpack.c.l.b16 %v1015
        %v1151 = vunpack.c.l.b16 %v1016
        %v1152 = vunpack.c.l.b16 %v1017
        %v1153 = vunpack.c.l.b16 %v1018
        %v1154 = vunpack.c.l.b16 %v1019
        %v1155 = vunpack.c.l.b16 %v1020
        %v1156 = vunpack.c.l.b16 %v1021
        %v1157 = vunpack.c.l.b16 %v1022
        %v1158 = vunpack.c.l.b16 %v1023
        %v1159 = vunpack.c.l.b16 %v1024
        %v1160 = vunpack.c.l.b16 %v1025
        %v1161 = vunpack.c.l.b16 %v1026
        %v1162 = vunpack.c.l.b16 %v1027
        %v1163 = vunpack.c.l.b16 %v1028
        %v1164 = vunpack.c.l.b16 %v1029
        %v1165 = vunpack.c.l.b16 %v1030
        %v1166 = vunpack.c.l.b16 %v1031
        %v1167 = vunpack.c.l.b16 %v1032
        %v1168 = vunpack.c.l.b16 %v1033
        %v1169 = vunpack.c.l.b16 %v1034
        %v1170 = vunpack.c.l.b16 %v1035
        %v1171 = vunpack.c.l.b16 %v1036
        %v1172 = vunpack.c.l.b16 %v1037
        %v1173 = vunpack.c.l.b16 %v1038
        %v1174 = vunpack.c.l.b16 %v1039
        %v1175 = vunpack.c.l.b16 %v1040
        %v1176 = vunpack.c.l.b16 %v1041
        %v1177 = vunpack.c.l.b16 %v1042
        %v1178 = vunpack.c.l.b16 %v1043
        %v1179 = vunpack.c.l.b16 %v1044
        %v1180 = vunpack.c.l.b16 %v1045
        %v1181 = vunpack.c.l.b16 %v1046
        %v1182 = vunpack.c.l.b16 %v1047
        %v1183 = vunpack.c.l.b16 %v1048
        %v1184 = vunpack.c.l.b16 %v1049
        %v1185 = vunpack.c.l.b16 %v1050
        %v1186 = vunpack.c.l.b16 %v1051
        %v1187 = vunpack.c.l.b16 %v1052
        %v1188 = vunpack.c.l.b16 %v1053
        %v1189 = vunpack.c.l.b16 %v1054
        %v1190 = vunpack.c.l.b16 %v1055
        %v1191 = vunpack.c.l.b16 %v1056
        %v1192 = vunpack.c.l.b16 %v1057
        %v1193 = vunpack.c.l.b16 %v1058
        %v1194 = vunpack.c.l.b16 %v1059
        %v1195 = vunpack.c.l.b16 %v1060
        %v1196 = vunpack.c.l.b16 %v1061
        %v1197 = vunpack.c.l.b16 %v1062
        %v1198 = vpack.c.b16 %v1135, %v1134
        %v1199 = vpack.c.b16 %v1137, %v1136
        %v1200 = vpack.c.b16 %v1139, %v1138
        %v1201 = vpack.c.b16 %v1141, %v1140
        %v1202 = vpack.c.b16 %v1143, %v1142
        %v1203 = vpack.c.b16 %v1145, %v1144
        %v1204 = vpack.c.b16 %v1147, %v1146
        %v1205 = vpack.c.b16 %v1149, %v1148
        %v1206 = vpack.c.b16 %v1151, %v1150
        %v1207 = vpack.c.b16 %v1153, %v1152
        %v1208 = vpack.c.b16 %v1155, %v1154
        %v1209 = vpack.c.b16 %v1157, %v1156
        %v1210 = vpack.c.b16 %v1159, %v1158
        %v1211 = vpack.c.b16 %v1161, %v1160
        %v1212 = vpack.c.b16 %v1163, %v1162
        %v1213 = vpack.c.b16 %v1165, %v1164
        %v1214 = vpack.c.b16 %v1167, %v1166
        %v1215 = vpack.c.b16 %v1169, %v1168
        %v1216 = vpack.c.b16 %v1171, %v1170
        %v1217 = vpack.c.b16 %v1173, %v1172
        %v1218 = vpack.c.b16 %v1175, %v1174
        %v1219 = vpack.c.b16 %v1177, %v1176
        %v1220 = vpack.c.b16 %v1179, %v1178
        %v1221 = vpack.c.b16 %v1181, %v1180
        %v1222 = vpack.c.b16 %v1183, %v1182
        %v1223 = vpack.c.b16 %v1185, %v1184
        %v1224 = vpack.c.b16 %v1187, %v1186
        %v1225 = vpack.c.b16 %v1189, %v1188
        %v1226 = vpack.c.b16 %v1191, %v1190
        %v1227 = vpack.c.b16 %v1193, %v1192
        %v1228 = vpack.c.b16 %v1195, %v1194
        %v1229 = vpack.c.b16 %v1197, %v1196
        %1262 = vmatprep.subr.bf16.mxu0 0
        %1263 = vmatpush1.bf16.msra.mxu0 %v1198
        %1264 = vmatprep.subr.bf16.mxu0 0
        %1265 = vmatpush1.bf16.msra.mxu0 %v1199
        %1266 = vmatprep.subr.bf16.mxu0 0
        %1267 = vmatpush1.bf16.msra.mxu0 %v1200
        %1268 = vmatprep.subr.bf16.mxu0 0
        %1269 = vmatpush1.bf16.msra.mxu0 %v1201
        %1270 = vmatprep.subr.bf16.mxu0 0
        %1271 = vmatpush1.bf16.msra.mxu0 %v1202
        %1272 = vmatprep.subr.bf16.mxu0 0
        %1273 = vmatpush1.bf16.msra.mxu0 %v1203
        %1274 = vmatprep.subr.bf16.mxu0 0
        %1275 = vmatpush1.bf16.msra.mxu0 %v1204
        %1276 = vmatprep.subr.bf16.mxu0 0
        %1277 = vmatpush1.bf16.msra.mxu0 %v1205
        %1278 = vmatprep.subr.bf16.mxu0 0
        %1279 = vmatpush1.bf16.msra.mxu0 %v1206
        %1280 = vmatprep.subr.bf16.mxu0 0
        %1281 = vmatpush1.bf16.msra.mxu0 %v1207
        %1282 = vmatprep.subr.bf16.mxu0 0
        %1283 = vmatpush1.bf16.msra.mxu0 %v1208
        %1284 = vmatprep.subr.bf16.mxu0 0
        %1285 = vmatpush1.bf16.msra.mxu0 %v1209
        %1286 = vmatprep.subr.bf16.mxu0 0
        %1287 = vmatpush1.bf16.msra.mxu0 %v1210
        %1288 = vmatprep.subr.bf16.mxu0 0
        %1289 = vmatpush1.bf16.msra.mxu0 %v1211
        %1290 = vmatprep.subr.bf16.mxu0 0
        %1291 = vmatpush1.bf16.msra.mxu0 %v1212
        %1292 = vmatprep.subr.bf16.mxu0 0
        %1293 = vmatpush1.bf16.msra.mxu0 %v1213
        %1294 = vmatprep.mubr.bf16.mxu0 %v992
        %1295 = vmatmul.mubr.bf16.gmra.mrb[0].mxu0 %v991
        %v1296 = vpop.f32.mrb[0].mxu0
        %v1297 = vadd.f32 %v1068, %v1296
        %v1298 = vpop.f32.mrb[0].mxu0
        %v1299 = vpop.f32.mrb[0].mxu0
        %v1300 = vadd.f32 %v1068, %v1299
        %v1301 = vpop.f32.mrb[0].mxu0
        %1302 = vmatprep.mubr.bf16.mxu0 %v996
        %1303 = vmatmul.mubr.bf16.gmra.mrb[0].mxu0 %v995
        %v1304 = vpop.f32.mrb[0].mxu0
        %v1305 = vadd.f32 %v1068, %v1304
        %v1306 = vpop.f32.mrb[0].mxu0
        %v1307 = vpop.f32.mrb[0].mxu0
        %v1308 = vadd.f32 %v1068, %v1307
        %v1309 = vpop.f32.mrb[0].mxu0
        %1310 = vdwg.mxu0
        %1311 = vmatprep.subr.bf16.mxu0 0
        %1312 = vmatpush1.bf16.msra.mxu0 %v1214
        %1313 = vmatprep.subr.bf16.mxu0 0
        %1314 = vmatpush1.bf16.msra.mxu0 %v1215
        %1315 = vmatprep.subr.bf16.mxu0 0
        %1316 = vmatpush1.bf16.msra.mxu0 %v1216
        %1317 = vmatprep.subr.bf16.mxu0 0
        %1318 = vmatpush1.bf16.msra.mxu0 %v1217
        %1319 = vmatprep.subr.bf16.mxu0 0
        %1320 = vmatpush1.bf16.msra.mxu0 %v1218
        %1321 = vmatprep.subr.bf16.mxu0 0
        %1322 = vmatpush1.bf16.msra.mxu0 %v1219
        %1323 = vmatprep.subr.bf16.mxu0 0
        %1324 = vmatpush1.bf16.msra.mxu0 %v1220
        %1325 = vmatprep.subr.bf16.mxu0 0
        %1326 = vmatpush1.bf16.msra.mxu0 %v1221
        %1327 = vmatprep.subr.bf16.mxu0 0
        %1328 = vmatpush1.bf16.msra.mxu0 %v1222
        %1329 = vmatprep.subr.bf16.mxu0 0
        %1330 = vmatpush1.bf16.msra.mxu0 %v1223
        %1331 = vmatprep.subr.bf16.mxu0 0
        %1332 = vmatpush1.bf16.msra.mxu0 %v1224
        %1333 = vmatprep.subr.bf16.mxu0 0
        %1334 = vmatpush1.bf16.msra.mxu0 %v1225
        %1335 = vmatprep.subr.bf16.mxu0 0
        %1336 = vmatpush1.bf16.msra.mxu0 %v1226
        %1337 = vmatprep.subr.bf16.mxu0 0
        %1338 = vmatpush1.bf16.msra.mxu0 %v1227
        %1339 = vmatprep.subr.bf16.mxu0 0
        %1340 = vmatpush1.bf16.msra.mxu0 %v1228
        %1341 = vmatprep.subr.bf16.mxu0 0
        %1342 = vmatpush1.bf16.msra.mxu0 %v1229
        %1343 = vmatprep.mubr.bf16.mxu0 %v994
        %1344 = vmatmul.mubr.bf16.gmra.mrb[0].mxu0 %v993
        %v1345 = vpop.f32.mrb[0].mxu0
        %v1346 = vadd.f32 %v1297, %v1345
        %v1347 = vpop.f32.mrb[0].mxu0
        %v1348 = vpop.f32.mrb[0].mxu0
        %v1349 = vadd.f32 %v1300, %v1348
        %v1350 = vpop.f32.mrb[0].mxu0
        %1351 = vmatprep.mubr.bf16.mxu0 %v998
        %1352 = vmatmul.mubr.bf16.gmra.mrb[0].mxu0 %v997
        %v1353 = vpop.f32.mrb[0].mxu0
        %v1354 = vadd.f32 %v1305, %v1353
        %v1355 = vpop.f32.mrb[0].mxu0
        %v1356 = vpop.f32.mrb[0].mxu0
        %v1357 = vadd.f32 %v1308, %v1356
        %v1358 = vpop.f32.mrb[0].mxu0
        %1359 = vdwg.mxu0
        %v1360 = vpack.c.bf16 %v1349, %v1346
        %v1361 = vpack.c.bf16 %v1357, %v1354
        %v1362 = vld [vmem:[#allocation9] sm:$0xf]
        %v1363 = vld [vmem:[#allocation9 + $0x4] sm:$0xf]
        %v1364 = vld [vmem:[#allocation9 + $0x8] sm:$0xf]
        %v1365 = vld [vmem:[#allocation9 + $0xc] sm:$0xf]
        %v1366 = vld [vmem:[#allocation9 + $0x10] sm:$0xf]
        %v1367 = vld [vmem:[#allocation9 + $0x14] sm:$0xf]
        %v1368 = vld [vmem:[#allocation9 + $0x18] sm:$0xf]
        %v1369 = vld [vmem:[#allocation9 + $0x1c] sm:$0xf]
        %v1370 = vld [vmem:[#allocation9 + $0x20] sm:$0xf]
        %v1371 = vld [vmem:[#allocation9 + $0x24] sm:$0xf]
        %v1372 = vld [vmem:[#allocation9 + $0x28] sm:$0xf]
        %v1373 = vld [vmem:[#allocation9 + $0x2c] sm:$0xf]
        %v1374 = vld [vmem:[#allocation9 + $0x30] sm:$0xf]
        %v1375 = vld [vmem:[#allocation9 + $0x34] sm:$0xf]
        %v1376 = vld [vmem:[#allocation9 + $0x38] sm:$0xf]
        %v1377 = vld [vmem:[#allocation9 + $0x3c] sm:$0xf]
        %v1378 = vld [vmem:[#allocation11] sm:$0xf]
        %v1379 = vld [vmem:[#allocation11 + $0x4] sm:$0xf]
        %v1380 = vld [vmem:[#allocation11 + $0x8] sm:$0xf]
        %v1381 = vld [vmem:[#allocation11 + $0xc] sm:$0xf]
        %v1382 = vld [vmem:[#allocation11 + $0x10] sm:$0xf]
        %v1383 = vld [vmem:[#allocation11 + $0x14] sm:$0xf]
        %v1384 = vld [vmem:[#allocation11 + $0x18] sm:$0xf]
        %v1385 = vld [vmem:[#allocation11 + $0x1c] sm:$0xf]
        %v1386 = vld [vmem:[#allocation11 + $0x20] sm:$0xf]
        %v1387 = vld [vmem:[#allocation11 + $0x24] sm:$0xf]
        %v1388 = vld [vmem:[#allocation11 + $0x28] sm:$0xf]
        %v1389 = vld [vmem:[#allocation11 + $0x2c] sm:$0xf]
        %v1390 = vld [vmem:[#allocation11 + $0x30] sm:$0xf]
        %v1391 = vld [vmem:[#allocation11 + $0x34] sm:$0xf]
        %v1392 = vld [vmem:[#allocation11 + $0x38] sm:$0xf]
        %v1393 = vld [vmem:[#allocation11 + $0x3c] sm:$0xf]
        %v1410 = vunpack.c.l.b16 %v1378
        %v1411 = vunpack.c.l.b16 %v1379
        %v1412 = vunpack.c.l.b16 %v1380
        %v1413 = vunpack.c.l.b16 %v1381
        %v1414 = vunpack.c.l.b16 %v1382
        %v1415 = vunpack.c.l.b16 %v1383
        %v1416 = vunpack.c.l.b16 %v1384
        %v1417 = vunpack.c.l.b16 %v1385
        %v1418 = vunpack.c.l.b16 %v1386
        %v1419 = vunpack.c.l.b16 %v1387
        %v1420 = vunpack.c.l.b16 %v1388
        %v1421 = vunpack.c.l.b16 %v1389
        %v1422 = vunpack.c.l.b16 %v1390
        %v1423 = vunpack.c.l.b16 %v1391
        %v1424 = vunpack.c.l.b16 %v1392
        %v1425 = vunpack.c.l.b16 %v1393
        %v1426 = vpack.c.b16 %v1411, %v1410
        %v1427 = vpack.c.b16 %v1413, %v1412
        %v1428 = vpack.c.b16 %v1415, %v1414
        %v1429 = vpack.c.b16 %v1417, %v1416
        %v1430 = vpack.c.b16 %v1419, %v1418
        %v1431 = vpack.c.b16 %v1421, %v1420
        %v1432 = vpack.c.b16 %v1423, %v1422
        %v1433 = vpack.c.b16 %v1425, %v1424
        %1442 = vmatprep.subr.bf16.mxu0 0
        %1443 = vmatpush1.bf16.msra.mxu0 %v1426
        %1444 = vmatprep.subr.bf16.mxu0 0
        %1445 = vmatpush1.bf16.msra.mxu0 %v1427
        %1446 = vmatprep.subr.bf16.mxu0 0
        %1447 = vmatpush1.bf16.msra.mxu0 %v1428
        %1448 = vmatprep.subr.bf16.mxu0 0
        %1449 = vmatpush1.bf16.msra.mxu0 %v1429
        %1450 = vmatprep.subr.bf16.mxu0 0
        %1451 = vmatpush1.bf16.msra.mxu0 %v1430
        %1452 = vmatprep.subr.bf16.mxu0 0
        %1453 = vmatpush1.bf16.msra.mxu0 %v1431
        %1454 = vmatprep.subr.bf16.mxu0 0
        %1455 = vmatpush1.bf16.msra.mxu0 %v1432
        %1456 = vmatprep.subr.bf16.mxu0 0
        %1457 = vmatpush1.bf16.msra.mxu0 %v1433
        %1458 = vmatprep.subr.bf16.mxu0 0
        %1459 = vmatpush1.bf16.msra.mxu0 0
        %1460 = vmatprep.subr.bf16.mxu0 0
        %1461 = vmatpush1.bf16.msra.mxu0 0
        %1462 = vmatprep.subr.bf16.mxu0 0
        %1463 = vmatpush1.bf16.msra.mxu0 0
        %1464 = vmatprep.subr.bf16.mxu0 0
        %1465 = vmatpush1.bf16.msra.mxu0 0
        %1466 = vmatprep.subr.bf16.mxu0 0
        %1467 = vmatpush1.bf16.msra.mxu0 0
        %1468 = vmatprep.subr.bf16.mxu0 0
        %1469 = vmatpush1.bf16.msra.mxu0 0
        %1470 = vmatprep.subr.bf16.mxu0 0
        %1471 = vmatpush1.bf16.msra.mxu0 0
        %1472 = vmatprep.subr.bf16.mxu0 0
        %1473 = vmatpush1.bf16.msra.mxu0 0
        %1474 = vmatprep.mubr.bf16.mxu0 0
        %1475 = vmatmul.mubr.bf16.gmra.mrb[0].mxu0 %v1361
        %v1476 = vpop.f32.mrb[0].mxu0
        %v1477 = vadd.f32 0.0, %v1476
        %v1478 = vpop.f32.mrb[0].mxu0
        %v1479 = vpop.f32.mrb[0].mxu0
        %v1480 = vadd.f32 0.0, %v1479
        %v1481 = vpop.f32.mrb[0].mxu0
        %1482 = vdwg.mxu0
        %v1499 = vunpack.c.l.b16 %v1362
        %v1500 = vunpack.c.l.b16 %v1363
        %v1501 = vunpack.c.l.b16 %v1364
        %v1502 = vunpack.c.l.b16 %v1365
        %v1503 = vunpack.c.l.b16 %v1366
        %v1504 = vunpack.c.l.b16 %v1367
        %v1505 = vunpack.c.l.b16 %v1368
        %v1506 = vunpack.c.l.b16 %v1369
        %v1507 = vunpack.c.l.b16 %v1370
        %v1508 = vunpack.c.l.b16 %v1371
        %v1509 = vunpack.c.l.b16 %v1372
        %v1510 = vunpack.c.l.b16 %v1373
        %v1511 = vunpack.c.l.b16 %v1374
        %v1512 = vunpack.c.l.b16 %v1375
        %v1513 = vunpack.c.l.b16 %v1376
        %v1514 = vunpack.c.l.b16 %v1377
        %v1515 = vpack.c.b16 %v1500, %v1499
        %v1516 = vpack.c.b16 %v1502, %v1501
        %v1517 = vpack.c.b16 %v1504, %v1503
        %v1518 = vpack.c.b16 %v1506, %v1505
        %v1519 = vpack.c.b16 %v1508, %v1507
        %v1520 = vpack.c.b16 %v1510, %v1509
        %v1521 = vpack.c.b16 %v1512, %v1511
        %v1522 = vpack.c.b16 %v1514, %v1513
        %1531 = vmatprep.subr.bf16.mxu0 0
        %1532 = vmatpush1.bf16.msra.mxu0 %v1515
        %1533 = vmatprep.subr.bf16.mxu0 0
        %1534 = vmatpush1.bf16.msra.mxu0 %v1516
        %1535 = vmatprep.subr.bf16.mxu0 0
        %1536 = vmatpush1.bf16.msra.mxu0 %v1517
        %1537 = vmatprep.subr.bf16.mxu0 0
        %1538 = vmatpush1.bf16.msra.mxu0 %v1518
        %1539 = vmatprep.subr.bf16.mxu0 0
        %1540 = vmatpush1.bf16.msra.mxu0 %v1519
        %1541 = vmatprep.subr.bf16.mxu0 0
        %1542 = vmatpush1.bf16.msra.mxu0 %v1520
        %1543 = vmatprep.subr.bf16.mxu0 0
        %1544 = vmatpush1.bf16.msra.mxu0 %v1521
        %1545 = vmatprep.subr.bf16.mxu0 0
        %1546 = vmatpush1.bf16.msra.mxu0 %v1522
        %1547 = vmatprep.subr.bf16.mxu0 0
        %1548 = vmatpush1.bf16.msra.mxu0 0
        %1549 = vmatprep.subr.bf16.mxu0 0
        %1550 = vmatpush1.bf16.msra.mxu0 0
        %1551 = vmatprep.subr.bf16.mxu0 0
        %1552 = vmatpush1.bf16.msra.mxu0 0
        %1553 = vmatprep.subr.bf16.mxu0 0
        %1554 = vmatpush1.bf16.msra.mxu0 0
        %1555 = vmatprep.subr.bf16.mxu0 0
        %1556 = vmatpush1.bf16.msra.mxu0 0
        %1557 = vmatprep.subr.bf16.mxu0 0
        %1558 = vmatpush1.bf16.msra.mxu0 0
        %1559 = vmatprep.subr.bf16.mxu0 0
        %1560 = vmatpush1.bf16.msra.mxu0 0
        %1561 = vmatprep.subr.bf16.mxu0 0
        %1562 = vmatpush1.bf16.msra.mxu0 0
        %1563 = vmatprep.mubr.bf16.mxu0 0
        %1564 = vmatmul.mubr.bf16.gmra.mrb[0].mxu0 %v1360
        %v1565 = vpop.f32.mrb[0].mxu0
        %v1566 = vadd.f32 %v1477, %v1565
        %v1567 = vpop.f32.mrb[0].mxu0
        %v1568 = vpop.f32.mrb[0].mxu0
        %v1569 = vadd.f32 %v1480, %v1568
        %v1570 = vpop.f32.mrb[0].mxu0
        %1571 = vdwg.mxu0
        %v1572 = vld [vmem:[%s7] sm:$0x1]
        %v1574 = vlaneseq
        %v1575 = vshrl.u32 %v1574, 7
        %v1576 = vsub.s32 0, %v1575
        %v1577 = vrot.slane %v1572, %v1576
        %v1579 = vadd.f32 %v1566, %v1577
        %v1580 = vadd.f32 %v1569, %v1577
        %v1581 = vmax.f32 %v1579, 0.0
        %v1582 = vmax.f32 %v1580, 0.0
        %v1583 = vld [vmem:[%s8] sm:$0x1]
        %v1584 = vpack.c.bf16 %v1582, %v1581
        %s1585 = sld [smem:[#allocation2]]
        %v1586 = vstv %s1585
        %1587 = vmatprep.subr.bf16.mxu0 0
        %1588 = vmatpush1.bf16.xpose.msra.mxu0 %v1584
        %1589 = vmatprep.subr.bf16.mxu0 0
        %1590 = vmatpush1.bf16.xpose.msra.mxu0 0
        %1591 = vmatprep.subr.bf16.mxu0 0
        %1592 = vmatpush1.bf16.xpose.msra.mxu0 0
        %1593 = vmatprep.subr.bf16.mxu0 0
        %1594 = vmatpush1.bf16.xpose.msra.mxu0 0
        %1595 = vmatprep.subr.bf16.mxu0 0
        %1596 = vmatpush1.bf16.xpose.msra.mxu0 0
        %1597 = vmatprep.subr.bf16.mxu0 0
        %1598 = vmatpush1.bf16.xpose.msra.mxu0 0
        %1599 = vmatprep.subr.bf16.mxu0 0
        %1600 = vmatpush1.bf16.xpose.msra.mxu0 0
        %1601 = vmatprep.subr.bf16.mxu0 0
        %1602 = vmatpush1.bf16.xpose.msra.mxu0 0
        %1603 = vmatprep.subr.bf16.mxu0 0
        %1604 = vmatpush1.bf16.xpose.msra.mxu0 0
        %1605 = vmatprep.subr.bf16.mxu0 0
        %1606 = vmatpush1.bf16.xpose.msra.mxu0 0
        %1607 = vmatprep.subr.bf16.mxu0 0
        %1608 = vmatpush1.bf16.xpose.msra.mxu0 0
        %1609 = vmatprep.subr.bf16.mxu0 0
        %1610 = vmatpush1.bf16.xpose.msra.mxu0 0
        %1611 = vmatprep.subr.bf16.mxu0 0
        %1612 = vmatpush1.bf16.xpose.msra.mxu0 0
        %1613 = vmatprep.subr.bf16.mxu0 0
        %1614 = vmatpush1.bf16.xpose.msra.mxu0 0
        %1615 = vmatprep.subr.bf16.mxu0 0
        %1616 = vmatpush1.bf16.xpose.msra.mxu0 0
        %1617 = vmatprep.subr.bf16.mxu0 0
        %1618 = vmatpush1.bf16.xpose.msra.mxu0 0
        %1619 = vmatprep.mubr.bf16.mxu0 0
        %1620 = vmatmul.mubr.bf16.gmra.mrb[0].mxu0 %v1583
        %v1621 = vpop.f32.mrb[0].mxu0
        %v1622 = vadd.f32 %v1586, %v1621
        %v1623 = vpop.f32.mrb[0].mxu0
        %v1624 = vpop.f32.mrb[0].mxu0
        %v1625 = vpop.f32.mrb[0].mxu0
        %1626 = vdwg.mxu0
        %vm1627 = vcmask 122880
        %1628 = vst.msk [vmem:[%s436] sm:$0x1] %vm1627, %v1622
        %s1629 = sand.u32 %s253, 1
        %s1630 = scalar_lea.sflag [#allocation5], %s1629
        %s1631 = sand.u32 %s253, 1
        %s1632 = scalar_lea.vmem [#allocation12], %s1631
        // Predicated region
        $region81: #{tpu_custom_call.1} parent=59 // pred_check
          %p1633 = pneg %p263
        $region82: #{tpu_custom_call.1} parent=59 // pred_check_branch
          %1635 = sbr.rel (%p1633) target = $region84
        $region83: #{tpu_custom_call.1} parent=59 // pred_region
          %s1637 = ssub.s32 16, 16
          %1638 = vsyncadd %s1630, %s1637
          %s1639 = smul.addr %s30, 16
          %s1640 = scalar_lea.hbm %s10, %s1639
          %s1642 = sshll.u32 %s1632, 4
          %s1643 = int_to_ptr.vmem [resolvable:$true] %s1642
          %1645 = dma.vmem_to_hbm [thread:$0]  %s1643, 16, %s1640, %s1630
        $region84: #{tpu_custom_call.1} parent=59 // pred_fallthru
          _
      $region60: #{tpu_custom_call.1} parent=5 // pred_fallthru
        _
      %p1646 = scmp.le.s32.totalorder 2, %s25
      // Predicated region
      $region85: #{tpu_custom_call.1} parent=5 // pred_check
        %p1647 = pneg %p1646
      $region86: #{tpu_custom_call.1} parent=5 // pred_check_branch
        %1649 = sbr.rel (%p1647) target = $region88
      $region87: #{tpu_custom_call.1} parent=5 // pred_region
        %s1650 = ssub.s32 %s25, 2
        // Predicated region
        $region89: #{tpu_custom_call.1} parent=87 // pred_check
          %p1651 = pneg %p269
        $region90: #{tpu_custom_call.1} parent=87 // pred_check_branch
          %1653 = sbr.rel (%p1651) target = $region92
        $region91: #{tpu_custom_call.1} parent=87 // pred_region
          %s1654 = sand.u32 %s254, 1
          %s1655 = scalar_lea.sflag [#allocation5], %s1654
          %s1656 = sand.u32 %s254, 1
          %s1657 = scalar_lea.vmem [#allocation12], %s1656
          %1658 = dma.done %s1655, 16
        $region92: #{tpu_custom_call.1} parent=87 // pred_fallthru
          _
      $region88: #{tpu_custom_call.1} parent=5 // pred_fallthru
        _
    $region6: #{tpu_custom_call.1} parent=1 // loop_footer
      %s29 = sadd.s32 1, %s25
    $region7: #{tpu_custom_call.1} parent=1 // loop_footer_branch
      %24 = sbr.rel target = $region3
    $region8: #{tpu_custom_call.1} parent=1 // loop_exit
      _
    %1659 = vsyncpa [#allocation4], 1
    %s1660 = scalar_lea.sflag [#allocation4], 1
    %1661 = vsyncpa %s1660, 1
    %1662 = vsyncpa [#allocation7], 1
    %1663 = vsyncpa [#allocation10], 1
    %1664 = vsyncpa [#allocation5], 1
    %s1665 = scalar_lea.sflag [#allocation5], 1
    %1666 = vsyncpa %s1665, 1

</llo_original>
